<compile_context>
chip_gen: v5e
topology: v5e:2x2
jax: 0.10.0
libtpu: 0.0.40
codegen_flags: <defaults>
</compile_context>

<pallas_src>
import functools

import jax
import jax.numpy as jnp
from jax.experimental import pallas as pl
from jax.experimental.pallas import tpu as pltpu


def _mha_kernel(x_ref, wqkv_ref, wp_ref, b_ref, out_ref, attn_ref, *,
                bs, nq, nc, num_heads, head_dim, dim):
    nq_rows = bs * nq
    nc_rows = bs * nc

    # Activation slab: query rows first, context rows after (static sublane
    # slices; bs*nq = 16 is a multiple of 8, so both slices are tile aligned).
    x_q = x_ref[0:nq_rows, :].astype(jnp.bfloat16)                 # (bs*nq, in_dim)
    x_c = x_ref[nq_rows:nq_rows + nc_rows, :].astype(jnp.bfloat16)  # (bs*nc, in_dim)

    # Fused full-lane-width projections (2 MXU problems instead of 18 per-head
    # N=64 dots).  Weight slab columns: [Wq^T * scale | Wk^T | Wv^T]; the lane
    # slices below start at multiples of 128 (dim = 384), so no relayout.
    w_q = wqkv_ref[:, 0:dim]                                        # (in_dim, dim)   bf16
    w_kv = wqkv_ref[:, dim:3 * dim]                                 # (in_dim, 2*dim) bf16
    q_all = jnp.dot(x_q, w_q, preferred_element_type=jnp.float32)   # (bs*nq, dim)  f32
    kv_all = jnp.dot(x_c, w_kv, preferred_element_type=jnp.float32)  # (bs*nc, 2*dim) f32
    k_all = kv_all[:, 0:dim]
    v_all = kv_all[:, dim:2 * dim]

    o_heads = []
    # Static per-head loop; the 64-lane per-head slices land on the XLU slot,
    # which is idle while the MXU/vector-extended slot binds.
    for h in range(num_heads):
        lo = h * head_dim
        qh = q_all[:, lo:lo + head_dim].reshape(bs, nq, head_dim)
        kh = k_all[:, lo:lo + head_dim].reshape(bs, nc, head_dim)
        vh = v_all[:, lo:lo + head_dim].reshape(bs, nc, head_dim)

        # Scores: contraction over head_dim, batched over bs — no k transpose.
        # (Scale already folded into Wq in the wrapper.)
        s = jnp.einsum('bqd,bkd->bqk', qh, kh,
                       preferred_element_type=jnp.float32)           # (bs, nq, nc)
        s = s - jnp.max(s, axis=-1, keepdims=True)
        p = jnp.exp(s)
        p = p * pl.reciprocal(jnp.sum(p, axis=-1, keepdims=True), approx=True)

        # attn_drop(p=0.0) -> identity.  Per-head store into a head-major
        # output: no epilogue stack/relayout, stores spread across the loop.
        attn_ref[h] = p

        oh = jnp.einsum('bqk,bkd->bqd', p, vh,
                        preferred_element_type=jnp.float32)          # (bs, nq, hd)
        o_heads.append(oh.reshape(bs * nq, head_dim))

    # Lane-concat the head outputs and do ONE K=dim output projection:
    # the head-sum rides in the MXU K accumulation instead of VALU adds.
    o_all = jnp.concatenate(o_heads, axis=-1).astype(jnp.bfloat16)   # (bs*nq, dim)
    proj = jnp.dot(o_all, wp_ref[...],
                   preferred_element_type=jnp.float32)               # (bs*nq, in_dim)
    # proj_drop(p=0.0) -> identity.
    out_ref[...] = (proj + b_ref[...]).reshape(bs, nq, -1)


def multi_head_attention(query, context, wq, wkv, wproj, bproj,
                         *, dim=384, num_heads=6):
    bs, nq, in_dim = query.shape
    nc = context.shape[1]
    head_dim = dim // num_heads
    scale = head_dim ** (-0.5)

    # ---- Wrapper-side (XLA) prep: fuse / transpose / cast weights once ----
    # nn.Linear stores (out_features, in_features); the kernel consumes the
    # already-transposed (in, out) layouts.  Attention scale folded into Wq.
    # MXU weight operands are pre-cast to bf16 (halves the weight DMA bytes);
    # accumulation stays f32 in-kernel.
    w_qkv = jnp.concatenate([wq.T * scale, wkv.T], axis=1).astype(jnp.bfloat16)  # (in, 3*dim)
    w_p = wproj.T.astype(jnp.bfloat16)                                           # (dim, in)
    b2d = bproj.reshape(1, in_dim)                                               # f32

    # One activation slab (query rows then context rows) -> one DMA.
    x_all = jnp.concatenate([query.reshape(bs * nq, in_dim),
                             context.reshape(bs * nc, in_dim)], axis=0)

    kernel = functools.partial(_mha_kernel, bs=bs, nq=nq, nc=nc,
                               num_heads=num_heads, head_dim=head_dim, dim=dim)

    out_shapes = (
        jax.ShapeDtypeStruct((bs, nq, in_dim), jnp.float32),
        # Head-major attention from the kernel; transposed (XLA side) below.
        jax.ShapeDtypeStruct((num_heads, bs, nq, nc), jnp.float32),
    )

    vmem = pl.BlockSpec(memory_space=pltpu.MemorySpace.VMEM)
    out, attn_hm = pl.pallas_call(
        kernel,
        out_shape=out_shapes,
        in_specs=[vmem, vmem, vmem, vmem],
        out_specs=(vmem, vmem),
    )(x_all, w_qkv, w_p, b2d)

    attn = jnp.transpose(attn_hm, (1, 0, 2, 3))   # (bs, H, nq, nc)
    return out, attn


def _reference(query, context, wq, wkv, wproj, bproj, *, dim, num_heads):
    bs, nq, in_dim = query.shape
    nc = context.shape[1]
    hd = dim // num_heads
    scale = hd ** (-0.5)
    q = (query @ wq.T).reshape(bs, nq, num_heads, hd).transpose(0, 2, 1, 3)
    kv = (context @ wkv.T).reshape(bs, nc, 2, num_heads, hd).transpose(2, 0, 3, 1, 4)
    k, v = kv[0], kv[1]
    attn = jnp.einsum('bhqd,bhkd->bhqk', q, k) * scale
    attn = jax.nn.softmax(attn, axis=-1)
    out = jnp.einsum('bhqk,bhkd->bhqd', attn, v).transpose(0, 2, 1, 3).reshape(bs, nq, dim)
    out = out @ wproj.T + bproj
    return out, attn


if __name__ == "__main__":
    # Small, module-consistent shapes.
    bs, nq, nc = 2, 8, 16
    in_dim, dim, num_heads = 32, 384, 6

    key = jax.random.PRNGKey(0)
    k1, k2, k3, k4, k5, k6 = jax.random.split(key, 6)

    query = jax.random.normal(k1, (bs, nq, in_dim), jnp.float32)
    context = jax.random.normal(k2, (bs, nc, in_dim), jnp.float32)

    # Deterministic parameter init (shapes follow nn.Linear: (out, in)).
    wq = jax.random.normal(k3, (dim, in_dim), jnp.float32) * 0.05
    wkv = jax.random.normal(k4, (2 * dim, in_dim), jnp.float32) * 0.05
    wproj = jax.random.normal(k5, (in_dim, dim), jnp.float32) * 0.05
    bproj = jax.random.normal(k6, (in_dim,), jnp.float32) * 0.05

    mha = jax.jit(functools.partial(multi_head_attention,
                                    dim=dim, num_heads=num_heads))
    out, attn = mha(query, context, wq, wkv, wproj, bproj)
    jax.block_until_ready((out, attn))

    out_ref, attn_ref = _reference(query, context, wq, wkv, wproj, bproj,
                                   dim=dim, num_heads=num_heads)
    assert out.shape == (bs, nq, in_dim)
    assert attn.shape == (bs, num_heads, nq, nc)
    # Tolerances relaxed vs pure-f32 because (a) MXU projection operands are
    # bf16 (f32 accumulation) and (b) the softmax denominator uses the EUP
    # approximate reciprocal.  Expected max error is a few 1e-3.
    assert jnp.allclose(attn, attn_ref, atol=5e-3, rtol=5e-3)
    assert jnp.allclose(out, out_ref, atol=1e-2, rtol=1e-2)

    print("KERNEL_OK")
</pallas_src>

<mosaic_0001>
module attributes {stable_mosaic.version = 11 : i64} {
  func.func @_mha_kernel(%arg0: memref<48x32xf32, #tpu.memory_space<vmem>>, %arg1: memref<32x1152xbf16, #tpu.memory_space<vmem>>, %arg2: memref<384x32xbf16, #tpu.memory_space<vmem>>, %arg3: memref<1x32xf32, #tpu.memory_space<vmem>>, %arg4: memref<2x8x32xf32, #tpu.memory_space<vmem>>, %arg5: memref<6x2x8x16xf32, #tpu.memory_space<vmem>>) attributes {dimension_semantics = [], scalar_prefetch = 0 : i64, scratch_operands = 0 : i64, tpu.core_type = #tpu.core_type<tc>} {
    %c0 = arith.constant 0 : index
    %c0_0 = arith.constant 0 : index
    %0 = vector.load %arg0[%c0, %c0_0] : memref<48x32xf32, #tpu.memory_space<vmem>>, vector<16x32xf32>
    %1 = arith.truncf %0 : vector<16x32xf32> to vector<16x32xbf16>
    %c16 = arith.constant 16 : index
    %c0_1 = arith.constant 0 : index
    %2 = vector.load %arg0[%c16, %c0_1] : memref<48x32xf32, #tpu.memory_space<vmem>>, vector<32x32xf32>
    %3 = arith.truncf %2 : vector<32x32xf32> to vector<32x32xbf16>
    %c0_2 = arith.constant 0 : index
    %c0_3 = arith.constant 0 : index
    %4 = vector.load %arg1[%c0_2, %c0_3] : memref<32x1152xbf16, #tpu.memory_space<vmem>>, vector<32x384xbf16>
    %c0_4 = arith.constant 0 : index
    %c384 = arith.constant 384 : index
    %5 = vector.load %arg1[%c0_4, %c384] : memref<32x1152xbf16, #tpu.memory_space<vmem>>, vector<32x768xbf16>
    %cst = arith.constant dense<0.000000e+00> : vector<16x384xf32>
    %6 = tpu.matmul %1, %4, %cst {dimension_numbers = #tpu.dot_dimension_numbers<[1], [0], [0], [1], [0, 0, 1, 1], [], []>} : vector<16x32xbf16>, vector<32x384xbf16>, vector<16x384xf32> -> vector<16x384xf32>
    %cst_5 = arith.constant dense<0.000000e+00> : vector<32x768xf32>
    %7 = tpu.matmul %3, %5, %cst_5 {dimension_numbers = #tpu.dot_dimension_numbers<[1], [0], [0], [1], [0, 0, 1, 1], [], []>} : vector<32x32xbf16>, vector<32x768xbf16>, vector<32x768xf32> -> vector<32x768xf32>
    %8 = vector.extract_strided_slice %7 {offsets = [0, 0], sizes = [32, 384], strides = [1, 1]} : vector<32x768xf32> to vector<32x384xf32>
    %9 = vector.extract_strided_slice %7 {offsets = [0, 384], sizes = [32, 384], strides = [1, 1]} : vector<32x768xf32> to vector<32x384xf32>
    %10 = vector.extract_strided_slice %6 {offsets = [0, 0], sizes = [16, 64], strides = [1, 1]} : vector<16x384xf32> to vector<16x64xf32>
    %11 = vector.shape_cast %10 : vector<16x64xf32> to vector<2x8x64xf32>
    %12 = vector.extract_strided_slice %8 {offsets = [0, 0], sizes = [32, 64], strides = [1, 1]} : vector<32x384xf32> to vector<32x64xf32>
    %13 = vector.shape_cast %12 : vector<32x64xf32> to vector<2x16x64xf32>
    %14 = vector.extract_strided_slice %9 {offsets = [0, 0], sizes = [32, 64], strides = [1, 1]} : vector<32x384xf32> to vector<32x64xf32>
    %15 = vector.shape_cast %14 : vector<32x64xf32> to vector<2x16x64xf32>
    "tpu.trace_start"() <{level = 10 : i32, message = "bqd,bkd->bqk"}> : () -> ()
    %cst_6 = arith.constant dense<0.000000e+00> : vector<2x8x16xf32>
    %16 = tpu.matmul %11, %13, %cst_6 {dimension_numbers = #tpu.dot_dimension_numbers<[2], [2], [1], [1], [0, 0, 0, 1, 1, 1], [0], [0]>} : vector<2x8x64xf32>, vector<2x16x64xf32>, vector<2x8x16xf32> -> vector<2x8x16xf32>
    "tpu.trace_stop"() : () -> ()
    %cst_7 = arith.constant dense<0xFF800000> : vector<2x8xf32>
    %17 = vector.multi_reduction <maximumf>, %16, %cst_7 [2] : vector<2x8x16xf32> to vector<2x8xf32>
    %18 = vector.shape_cast %17 : vector<2x8xf32> to vector<2x8x1xf32>
    %19 = vector.broadcast %18 : vector<2x8x1xf32> to vector<2x8x16xf32>
    %20 = arith.subf %16, %19 : vector<2x8x16xf32>
    %21 = math.exp %20 : vector<2x8x16xf32>
    %cst_8 = arith.constant dense<0.000000e+00> : vector<2x8xf32>
    %22 = vector.multi_reduction <add>, %21, %cst_8 [2] : vector<2x8x16xf32> to vector<2x8xf32>
    %23 = vector.shape_cast %22 : vector<2x8xf32> to vector<2x8x1xf32>
    %24 = tpu.reciprocal %23 {approx = true} : vector<2x8x1xf32> -> vector<2x8x1xf32>
    %25 = vector.broadcast %24 : vector<2x8x1xf32> to vector<2x8x16xf32>
    %26 = arith.mulf %21, %25 : vector<2x8x16xf32>
    %c0_9 = arith.constant 0 : index
    %c0_10 = arith.constant 0 : index
    %c0_11 = arith.constant 0 : index
    %c0_12 = arith.constant 0 : index
    %27 = vector.load %arg5[%c0_9, %c0_10, %c0_11, %c0_12] : memref<6x2x8x16xf32, #tpu.memory_space<vmem>>, vector<1x2x8x16xf32>
    %28 = vector.shape_cast %27 : vector<1x2x8x16xf32> to vector<2x8x16xf32>
    %29 = vector.shape_cast %26 : vector<2x8x16xf32> to vector<1x2x8x16xf32>
    tpu.vector_store %arg5[%c0_9, %c0_10, %c0_11, %c0_12], %29 {strides = array<i32>} : memref<6x2x8x16xf32, #tpu.memory_space<vmem>>, vector<1x2x8x16xf32>,
    "tpu.trace_start"() <{level = 10 : i32, message = "bqk,bkd->bqd"}> : () -> ()
    %cst_13 = arith.constant dense<0.000000e+00> : vector<2x8x64xf32>
    %30 = tpu.matmul %26, %15, %cst_13 {dimension_numbers = #tpu.dot_dimension_numbers<[2], [1], [1], [2], [0, 0, 0, 1, 1, 2], [0], [0]>} : vector<2x8x16xf32>, vector<2x16x64xf32>, vector<2x8x64xf32> -> vector<2x8x64xf32>
    "tpu.trace_stop"() : () -> ()
    %31 = vector.shape_cast %30 : vector<2x8x64xf32> to vector<16x64xf32>
    %32 = vector.extract_strided_slice %6 {offsets = [0, 64], sizes = [16, 64], strides = [1, 1]} : vector<16x384xf32> to vector<16x64xf32>
    %33 = vector.shape_cast %32 : vector<16x64xf32> to vector<2x8x64xf32>
    %34 = vector.extract_strided_slice %8 {offsets = [0, 64], sizes = [32, 64], strides = [1, 1]} : vector<32x384xf32> to vector<32x64xf32>
    %35 = vector.shape_cast %34 : vector<32x64xf32> to vector<2x16x64xf32>
    %36 = vector.extract_strided_slice %9 {offsets = [0, 64], sizes = [32, 64], strides = [1, 1]} : vector<32x384xf32> to vector<32x64xf32>
    %37 = vector.shape_cast %36 : vector<32x64xf32> to vector<2x16x64xf32>
    "tpu.trace_start"() <{level = 10 : i32, message = "bqd,bkd->bqk"}> : () -> ()
    %cst_14 = arith.constant dense<0.000000e+00> : vector<2x8x16xf32>
    %38 = tpu.matmul %33, %35, %cst_14 {dimension_numbers = #tpu.dot_dimension_numbers<[2], [2], [1], [1], [0, 0, 0, 1, 1, 1], [0], [0]>} : vector<2x8x64xf32>, vector<2x16x64xf32>, vector<2x8x16xf32> -> vector<2x8x16xf32>
    "tpu.trace_stop"() : () -> ()
    %cst_15 = arith.constant dense<0xFF800000> : vector<2x8xf32>
    %39 = vector.multi_reduction <maximumf>, %38, %cst_15 [2] : vector<2x8x16xf32> to vector<2x8xf32>
    %40 = vector.shape_cast %39 : vector<2x8xf32> to vector<2x8x1xf32>
    %41 = vector.broadcast %40 : vector<2x8x1xf32> to vector<2x8x16xf32>
    %42 = arith.subf %38, %41 : vector<2x8x16xf32>
    %43 = math.exp %42 : vector<2x8x16xf32>
    %cst_16 = arith.constant dense<0.000000e+00> : vector<2x8xf32>
    %44 = vector.multi_reduction <add>, %43, %cst_16 [2] : vector<2x8x16xf32> to vector<2x8xf32>
    %45 = vector.shape_cast %44 : vector<2x8xf32> to vector<2x8x1xf32>
    %46 = tpu.reciprocal %45 {approx = true} : vector<2x8x1xf32> -> vector<2x8x1xf32>
    %47 = vector.broadcast %46 : vector<2x8x1xf32> to vector<2x8x16xf32>
    %48 = arith.mulf %43, %47 : vector<2x8x16xf32>
    %c1 = arith.constant 1 : index
    %c0_17 = arith.constant 0 : index
    %c0_18 = arith.constant 0 : index
    %c0_19 = arith.constant 0 : index
    %49 = vector.load %arg5[%c1, %c0_17, %c0_18, %c0_19] : memref<6x2x8x16xf32, #tpu.memory_space<vmem>>, vector<1x2x8x16xf32>
    %50 = vector.shape_cast %49 : vector<1x2x8x16xf32> to vector<2x8x16xf32>
    %51 = vector.shape_cast %48 : vector<2x8x16xf32> to vector<1x2x8x16xf32>
    tpu.vector_store %arg5[%c1, %c0_17, %c0_18, %c0_19], %51 {strides = array<i32>} : memref<6x2x8x16xf32, #tpu.memory_space<vmem>>, vector<1x2x8x16xf32>,
    "tpu.trace_start"() <{level = 10 : i32, message = "bqk,bkd->bqd"}> : () -> ()
    %cst_20 = arith.constant dense<0.000000e+00> : vector<2x8x64xf32>
    %52 = tpu.matmul %48, %37, %cst_20 {dimension_numbers = #tpu.dot_dimension_numbers<[2], [1], [1], [2], [0, 0, 0, 1, 1, 2], [0], [0]>} : vector<2x8x16xf32>, vector<2x16x64xf32>, vector<2x8x64xf32> -> vector<2x8x64xf32>
    "tpu.trace_stop"() : () -> ()
    %53 = vector.shape_cast %52 : vector<2x8x64xf32> to vector<16x64xf32>
    %54 = vector.extract_strided_slice %6 {offsets = [0, 128], sizes = [16, 64], strides = [1, 1]} : vector<16x384xf32> to vector<16x64xf32>
    %55 = vector.shape_cast %54 : vector<16x64xf32> to vector<2x8x64xf32>
    %56 = vector.extract_strided_slice %8 {offsets = [0, 128], sizes = [32, 64], strides = [1, 1]} : vector<32x384xf32> to vector<32x64xf32>
    %57 = vector.shape_cast %56 : vector<32x64xf32> to vector<2x16x64xf32>
    %58 = vector.extract_strided_slice %9 {offsets = [0, 128], sizes = [32, 64], strides = [1, 1]} : vector<32x384xf32> to vector<32x64xf32>
    %59 = vector.shape_cast %58 : vector<32x64xf32> to vector<2x16x64xf32>
    "tpu.trace_start"() <{level = 10 : i32, message = "bqd,bkd->bqk"}> : () -> ()
    %cst_21 = arith.constant dense<0.000000e+00> : vector<2x8x16xf32>
    %60 = tpu.matmul %55, %57, %cst_21 {dimension_numbers = #tpu.dot_dimension_numbers<[2], [2], [1], [1], [0, 0, 0, 1, 1, 1], [0], [0]>} : vector<2x8x64xf32>, vector<2x16x64xf32>, vector<2x8x16xf32> -> vector<2x8x16xf32>
    "tpu.trace_stop"() : () -> ()
    %cst_22 = arith.constant dense<0xFF800000> : vector<2x8xf32>
    %61 = vector.multi_reduction <maximumf>, %60, %cst_22 [2] : vector<2x8x16xf32> to vector<2x8xf32>
    %62 = vector.shape_cast %61 : vector<2x8xf32> to vector<2x8x1xf32>
    %63 = vector.broadcast %62 : vector<2x8x1xf32> to vector<2x8x16xf32>
    %64 = arith.subf %60, %63 : vector<2x8x16xf32>
    %65 = math.exp %64 : vector<2x8x16xf32>
    %cst_23 = arith.constant dense<0.000000e+00> : vector<2x8xf32>
    %66 = vector.multi_reduction <add>, %65, %cst_23 [2] : vector<2x8x16xf32> to vector<2x8xf32>
    %67 = vector.shape_cast %66 : vector<2x8xf32> to vector<2x8x1xf32>
    %68 = tpu.reciprocal %67 {approx = true} : vector<2x8x1xf32> -> vector<2x8x1xf32>
    %69 = vector.broadcast %68 : vector<2x8x1xf32> to vector<2x8x16xf32>
    %70 = arith.mulf %65, %69 : vector<2x8x16xf32>
    %c2 = arith.constant 2 : index
    %c0_24 = arith.constant 0 : index
    %c0_25 = arith.constant 0 : index
    %c0_26 = arith.constant 0 : index
    %71 = vector.load %arg5[%c2, %c0_24, %c0_25, %c0_26] : memref<6x2x8x16xf32, #tpu.memory_space<vmem>>, vector<1x2x8x16xf32>
    %72 = vector.shape_cast %71 : vector<1x2x8x16xf32> to vector<2x8x16xf32>
    %73 = vector.shape_cast %70 : vector<2x8x16xf32> to vector<1x2x8x16xf32>
    tpu.vector_store %arg5[%c2, %c0_24, %c0_25, %c0_26], %73 {strides = array<i32>} : memref<6x2x8x16xf32, #tpu.memory_space<vmem>>, vector<1x2x8x16xf32>,
    "tpu.trace_start"() <{level = 10 : i32, message = "bqk,bkd->bqd"}> : () -> ()
    %cst_27 = arith.constant dense<0.000000e+00> : vector<2x8x64xf32>
    %74 = tpu.matmul %70, %59, %cst_27 {dimension_numbers = #tpu.dot_dimension_numbers<[2], [1], [1], [2], [0, 0, 0, 1, 1, 2], [0], [0]>} : vector<2x8x16xf32>, vector<2x16x64xf32>, vector<2x8x64xf32> -> vector<2x8x64xf32>
    "tpu.trace_stop"() : () -> ()
    %75 = vector.shape_cast %74 : vector<2x8x64xf32> to vector<16x64xf32>
    %76 = vector.extract_strided_slice %6 {offsets = [0, 192], sizes = [16, 64], strides = [1, 1]} : vector<16x384xf32> to vector<16x64xf32>
    %77 = vector.shape_cast %76 : vector<16x64xf32> to vector<2x8x64xf32>
    %78 = vector.extract_strided_slice %8 {offsets = [0, 192], sizes = [32, 64], strides = [1, 1]} : vector<32x384xf32> to vector<32x64xf32>
    %79 = vector.shape_cast %78 : vector<32x64xf32> to vector<2x16x64xf32>
    %80 = vector.extract_strided_slice %9 {offsets = [0, 192], sizes = [32, 64], strides = [1, 1]} : vector<32x384xf32> to vector<32x64xf32>
    %81 = vector.shape_cast %80 : vector<32x64xf32> to vector<2x16x64xf32>
    "tpu.trace_start"() <{level = 10 : i32, message = "bqd,bkd->bqk"}> : () -> ()
    %cst_28 = arith.constant dense<0.000000e+00> : vector<2x8x16xf32>
    %82 = tpu.matmul %77, %79, %cst_28 {dimension_numbers = #tpu.dot_dimension_numbers<[2], [2], [1], [1], [0, 0, 0, 1, 1, 1], [0], [0]>} : vector<2x8x64xf32>, vector<2x16x64xf32>, vector<2x8x16xf32> -> vector<2x8x16xf32>
    "tpu.trace_stop"() : () -> ()
    %cst_29 = arith.constant dense<0xFF800000> : vector<2x8xf32>
    %83 = vector.multi_reduction <maximumf>, %82, %cst_29 [2] : vector<2x8x16xf32> to vector<2x8xf32>
    %84 = vector.shape_cast %83 : vector<2x8xf32> to vector<2x8x1xf32>
    %85 = vector.broadcast %84 : vector<2x8x1xf32> to vector<2x8x16xf32>
    %86 = arith.subf %82, %85 : vector<2x8x16xf32>
    %87 = math.exp %86 : vector<2x8x16xf32>
    %cst_30 = arith.constant dense<0.000000e+00> : vector<2x8xf32>
    %88 = vector.multi_reduction <add>, %87, %cst_30 [2] : vector<2x8x16xf32> to vector<2x8xf32>
    %89 = vector.shape_cast %88 : vector<2x8xf32> to vector<2x8x1xf32>
    %90 = tpu.reciprocal %89 {approx = true} : vector<2x8x1xf32> -> vector<2x8x1xf32>
    %91 = vector.broadcast %90 : vector<2x8x1xf32> to vector<2x8x16xf32>
    %92 = arith.mulf %87, %91 : vector<2x8x16xf32>
    %c3 = arith.constant 3 : index
    %c0_31 = arith.constant 0 : index
    %c0_32 = arith.constant 0 : index
    %c0_33 = arith.constant 0 : index
    %93 = vector.load %arg5[%c3, %c0_31, %c0_32, %c0_33] : memref<6x2x8x16xf32, #tpu.memory_space<vmem>>, vector<1x2x8x16xf32>
    %94 = vector.shape_cast %93 : vector<1x2x8x16xf32> to vector<2x8x16xf32>
    %95 = vector.shape_cast %92 : vector<2x8x16xf32> to vector<1x2x8x16xf32>
    tpu.vector_store %arg5[%c3, %c0_31, %c0_32, %c0_33], %95 {strides = array<i32>} : memref<6x2x8x16xf32, #tpu.memory_space<vmem>>, vector<1x2x8x16xf32>,
    "tpu.trace_start"() <{level = 10 : i32, message = "bqk,bkd->bqd"}> : () -> ()
    %cst_34 = arith.constant dense<0.000000e+00> : vector<2x8x64xf32>
    %96 = tpu.matmul %92, %81, %cst_34 {dimension_numbers = #tpu.dot_dimension_numbers<[2], [1], [1], [2], [0, 0, 0, 1, 1, 2], [0], [0]>} : vector<2x8x16xf32>, vector<2x16x64xf32>, vector<2x8x64xf32> -> vector<2x8x64xf32>
    "tpu.trace_stop"() : () -> ()
    %97 = vector.shape_cast %96 : vector<2x8x64xf32> to vector<16x64xf32>
    %98 = vector.extract_strided_slice %6 {offsets = [0, 256], sizes = [16, 64], strides = [1, 1]} : vector<16x384xf32> to vector<16x64xf32>
    %99 = vector.shape_cast %98 : vector<16x64xf32> to vector<2x8x64xf32>
    %100 = vector.extract_strided_slice %8 {offsets = [0, 256], sizes = [32, 64], strides = [1, 1]} : vector<32x384xf32> to vector<32x64xf32>
    %101 = vector.shape_cast %100 : vector<32x64xf32> to vector<2x16x64xf32>
    %102 = vector.extract_strided_slice %9 {offsets = [0, 256], sizes = [32, 64], strides = [1, 1]} : vector<32x384xf32> to vector<32x64xf32>
    %103 = vector.shape_cast %102 : vector<32x64xf32> to vector<2x16x64xf32>
    "tpu.trace_start"() <{level = 10 : i32, message = "bqd,bkd->bqk"}> : () -> ()
    %cst_35 = arith.constant dense<0.000000e+00> : vector<2x8x16xf32>
    %104 = tpu.matmul %99, %101, %cst_35 {dimension_numbers = #tpu.dot_dimension_numbers<[2], [2], [1], [1], [0, 0, 0, 1, 1, 1], [0], [0]>} : vector<2x8x64xf32>, vector<2x16x64xf32>, vector<2x8x16xf32> -> vector<2x8x16xf32>
    "tpu.trace_stop"() : () -> ()
    %cst_36 = arith.constant dense<0xFF800000> : vector<2x8xf32>
    %105 = vector.multi_reduction <maximumf>, %104, %cst_36 [2] : vector<2x8x16xf32> to vector<2x8xf32>
    %106 = vector.shape_cast %105 : vector<2x8xf32> to vector<2x8x1xf32>
    %107 = vector.broadcast %106 : vector<2x8x1xf32> to vector<2x8x16xf32>
    %108 = arith.subf %104, %107 : vector<2x8x16xf32>
    %109 = math.exp %108 : vector<2x8x16xf32>
    %cst_37 = arith.constant dense<0.000000e+00> : vector<2x8xf32>
    %110 = vector.multi_reduction <add>, %109, %cst_37 [2] : vector<2x8x16xf32> to vector<2x8xf32>
    %111 = vector.shape_cast %110 : vector<2x8xf32> to vector<2x8x1xf32>
    %112 = tpu.reciprocal %111 {approx = true} : vector<2x8x1xf32> -> vector<2x8x1xf32>
    %113 = vector.broadcast %112 : vector<2x8x1xf32> to vector<2x8x16xf32>
    %114 = arith.mulf %109, %113 : vector<2x8x16xf32>
    %c4 = arith.constant 4 : index
    %c0_38 = arith.constant 0 : index
    %c0_39 = arith.constant 0 : index
    %c0_40 = arith.constant 0 : index
    %115 = vector.load %arg5[%c4, %c0_38, %c0_39, %c0_40] : memref<6x2x8x16xf32, #tpu.memory_space<vmem>>, vector<1x2x8x16xf32>
    %116 = vector.shape_cast %115 : vector<1x2x8x16xf32> to vector<2x8x16xf32>
    %117 = vector.shape_cast %114 : vector<2x8x16xf32> to vector<1x2x8x16xf32>
    tpu.vector_store %arg5[%c4, %c0_38, %c0_39, %c0_40], %117 {strides = array<i32>} : memref<6x2x8x16xf32, #tpu.memory_space<vmem>>, vector<1x2x8x16xf32>,
    "tpu.trace_start"() <{level = 10 : i32, message = "bqk,bkd->bqd"}> : () -> ()
    %cst_41 = arith.constant dense<0.000000e+00> : vector<2x8x64xf32>
    %118 = tpu.matmul %114, %103, %cst_41 {dimension_numbers = #tpu.dot_dimension_numbers<[2], [1], [1], [2], [0, 0, 0, 1, 1, 2], [0], [0]>} : vector<2x8x16xf32>, vector<2x16x64xf32>, vector<2x8x64xf32> -> vector<2x8x64xf32>
    "tpu.trace_stop"() : () -> ()
    %119 = vector.shape_cast %118 : vector<2x8x64xf32> to vector<16x64xf32>
    %120 = vector.extract_strided_slice %6 {offsets = [0, 320], sizes = [16, 64], strides = [1, 1]} : vector<16x384xf32> to vector<16x64xf32>
    %121 = vector.shape_cast %120 : vector<16x64xf32> to vector<2x8x64xf32>
    %122 = vector.extract_strided_slice %8 {offsets = [0, 320], sizes = [32, 64], strides = [1, 1]} : vector<32x384xf32> to vector<32x64xf32>
    %123 = vector.shape_cast %122 : vector<32x64xf32> to vector<2x16x64xf32>
    %124 = vector.extract_strided_slice %9 {offsets = [0, 320], sizes = [32, 64], strides = [1, 1]} : vector<32x384xf32> to vector<32x64xf32>
    %125 = vector.shape_cast %124 : vector<32x64xf32> to vector<2x16x64xf32>
    "tpu.trace_start"() <{level = 10 : i32, message = "bqd,bkd->bqk"}> : () -> ()
    %cst_42 = arith.constant dense<0.000000e+00> : vector<2x8x16xf32>
    %126 = tpu.matmul %121, %123, %cst_42 {dimension_numbers = #tpu.dot_dimension_numbers<[2], [2], [1], [1], [0, 0, 0, 1, 1, 1], [0], [0]>} : vector<2x8x64xf32>, vector<2x16x64xf32>, vector<2x8x16xf32> -> vector<2x8x16xf32>
    "tpu.trace_stop"() : () -> ()
    %cst_43 = arith.constant dense<0xFF800000> : vector<2x8xf32>
    %127 = vector.multi_reduction <maximumf>, %126, %cst_43 [2] : vector<2x8x16xf32> to vector<2x8xf32>
    %128 = vector.shape_cast %127 : vector<2x8xf32> to vector<2x8x1xf32>
    %129 = vector.broadcast %128 : vector<2x8x1xf32> to vector<2x8x16xf32>
    %130 = arith.subf %126, %129 : vector<2x8x16xf32>
    %131 = math.exp %130 : vector<2x8x16xf32>
    %cst_44 = arith.constant dense<0.000000e+00> : vector<2x8xf32>
    %132 = vector.multi_reduction <add>, %131, %cst_44 [2] : vector<2x8x16xf32> to vector<2x8xf32>
    %133 = vector.shape_cast %132 : vector<2x8xf32> to vector<2x8x1xf32>
    %134 = tpu.reciprocal %133 {approx = true} : vector<2x8x1xf32> -> vector<2x8x1xf32>
    %135 = vector.broadcast %134 : vector<2x8x1xf32> to vector<2x8x16xf32>
    %136 = arith.mulf %131, %135 : vector<2x8x16xf32>
    %c5 = arith.constant 5 : index
    %c0_45 = arith.constant 0 : index
    %c0_46 = arith.constant 0 : index
    %c0_47 = arith.constant 0 : index
    %137 = vector.load %arg5[%c5, %c0_45, %c0_46, %c0_47] : memref<6x2x8x16xf32, #tpu.memory_space<vmem>>, vector<1x2x8x16xf32>
    %138 = vector.shape_cast %137 : vector<1x2x8x16xf32> to vector<2x8x16xf32>
    %139 = vector.shape_cast %136 : vector<2x8x16xf32> to vector<1x2x8x16xf32>
    tpu.vector_store %arg5[%c5, %c0_45, %c0_46, %c0_47], %139 {strides = array<i32>} : memref<6x2x8x16xf32, #tpu.memory_space<vmem>>, vector<1x2x8x16xf32>,
    "tpu.trace_start"() <{level = 10 : i32, message = "bqk,bkd->bqd"}> : () -> ()
    %cst_48 = arith.constant dense<0.000000e+00> : vector<2x8x64xf32>
    %140 = tpu.matmul %136, %125, %cst_48 {dimension_numbers = #tpu.dot_dimension_numbers<[2], [1], [1], [2], [0, 0, 0, 1, 1, 2], [0], [0]>} : vector<2x8x16xf32>, vector<2x16x64xf32>, vector<2x8x64xf32> -> vector<2x8x64xf32>
    "tpu.trace_stop"() : () -> ()
    %141 = vector.shape_cast %140 : vector<2x8x64xf32> to vector<16x64xf32>
    %142 = tpu.concatenate %31, %53, %75, %97, %119, %141 in 1 : vector<16x64xf32>, vector<16x64xf32>, vector<16x64xf32>, vector<16x64xf32>, vector<16x64xf32>, vector<16x64xf32> -> vector<16x384xf32>
    %143 = arith.truncf %142 : vector<16x384xf32> to vector<16x384xbf16>
    %c0_49 = arith.constant 0 : index
    %c0_50 = arith.constant 0 : index
    %144 = vector.load %arg2[%c0_49, %c0_50] : memref<384x32xbf16, #tpu.memory_space<vmem>>, vector<384x32xbf16>
    %cst_51 = arith.constant dense<0.000000e+00> : vector<16x32xf32>
    %145 = tpu.matmul %143, %144, %cst_51 {dimension_numbers = #tpu.dot_dimension_numbers<[1], [0], [0], [1], [0, 0, 1, 1], [], []>} : vector<16x384xbf16>, vector<384x32xbf16>, vector<16x32xf32> -> vector<16x32xf32>
    %c0_52 = arith.constant 0 : index
    %c0_53 = arith.constant 0 : index
    %146 = vector.load %arg3[%c0_52, %c0_53] : memref<1x32xf32, #tpu.memory_space<vmem>>, vector<1x32xf32>
    %147 = vector.broadcast %146 : vector<1x32xf32> to vector<16x32xf32>
    %148 = arith.addf %145, %147 : vector<16x32xf32>
    %149 = vector.shape_cast %148 : vector<16x32xf32> to vector<2x8x32xf32>
    %c0_54 = arith.constant 0 : index
    %c0_55 = arith.constant 0 : index
    %c0_56 = arith.constant 0 : index
    %150 = vector.load %arg4[%c0_54, %c0_55, %c0_56] : memref<2x8x32xf32, #tpu.memory_space<vmem>>, vector<2x8x32xf32>
    tpu.vector_store %arg4[%c0_54, %c0_55, %c0_56], %149 {strides = array<i32>} : memref<2x8x32xf32, #tpu.memory_space<vmem>>, vector<2x8x32xf32>,
    return
  }
}

</mosaic_0001>

<llo_original>
// kernel: multi_head_attention.1
$region0: #{multi_head_attention.1}
  #allocation0 [shape = 'u32[]', space=smem, size = 0x4, offset = 0x4, fixed_abs, tag = 'smem constant byte address 0x4 - core index']
  #allocation1 [shape = 'u32[72,128]{1,0:T(1,128)}', space=vmem, size = 0x9000, scoped, tag = 'internal scratch']
  %s0 = inlined_call_operand.vmem [shape: f32[48,32], index: 0, kind: input, shape index: {}]
  %s1 = inlined_call_operand.vmem [shape: bf16[32,1152], index: 1, kind: input, shape index: {}]
  %s2 = inlined_call_operand.vmem [shape: bf16[384,32], index: 2, kind: input, shape index: {}]
  %s3 = inlined_call_operand.vmem [shape: f32[1,32], index: 3, kind: input, shape index: {}]
  %s4 = inlined_call_operand.hbm [shape: f32[2,8,32], index: 4, kind: output, shape index: {0}]
  %s5 = inlined_call_operand.vmem [shape: f32[6,2,8,16], index: 5, kind: output, shape index: {1}]
  %6 = xla_tuple %s4, %s5
  %s7 = sld [smem:[#allocation0]]
  $region34: #{multi_head_attention.1} parent=0
    _
  %s9 = ssub.s32 1, %s7
  %s10 = scalar_select 0, %s9, %s7
  $region1: #{multi_head_attention.1} parent=0
    #allocation2 [shape = 'u8[8192]{0}', space=vmem, size = 0x2000, scoped, tag = 'output window, operand 0, single buffered']
    #allocation3 [shape = 's32[1]{0}', space=sflag, size = 0x4, scoped, tag = 'scoped memory for multi_head_attention.1']
    %11 = vsyncpa [#allocation3], 0
    // Predicated region
    $region2: #{multi_head_attention.1} parent=1 // pred_check
      _
    $region3: #{multi_head_attention.1} parent=1 // pred_check_branch
      %13 = sbr.rel (0) target = $region5
    $region4: #{multi_head_attention.1} parent=1 // pred_region
      _
    $region5: #{multi_head_attention.1} parent=1 // pred_fallthru
      _
    // Predicated region
    $region6: #{multi_head_attention.1} parent=1 // pred_check
      _
    $region7: #{multi_head_attention.1} parent=1 // pred_check_branch
      %15 = sbr.rel (0) target = $region9
    $region8: #{multi_head_attention.1} parent=1 // pred_region
      _
    $region9: #{multi_head_attention.1} parent=1 // pred_fallthru
      _
    // Predicated region
    $region10: #{multi_head_attention.1} parent=1 // pred_check
      _
    $region11: #{multi_head_attention.1} parent=1 // pred_check_branch
      %17 = sbr.rel (0) target = $region13
    $region12: #{multi_head_attention.1} parent=1 // pred_region
      _
    $region13: #{multi_head_attention.1} parent=1 // pred_fallthru
      _
    // Predicated region
    $region14: #{multi_head_attention.1} parent=1 // pred_check
      _
    $region15: #{multi_head_attention.1} parent=1 // pred_check_branch
      %19 = sbr.rel (0) target = $region17
    $region16: #{multi_head_attention.1} parent=1 // pred_region
      _
    $region17: #{multi_head_attention.1} parent=1 // pred_fallthru
      _
    %v21 = vld [vmem:[%s0] sm:$0xff]
    %v22 = vld [vmem:[%s0 + $0x8] sm:$0xff]
    %v23 = vpack.c.bf16 %v22, %v21
    %v24 = vld [vmem:[%s0 + $0x10] sm:$0xff]
    %v25 = vld [vmem:[%s0 + $0x18] sm:$0xff]
    %v26 = vld [vmem:[%s0 + $0x20] sm:$0xff]
    %v27 = vld [vmem:[%s0 + $0x28] sm:$0xff]
    %v28 = vpack.c.bf16 %v25, %v24
    %v29 = vpack.c.bf16 %v27, %v26
    %v30 = vld [vmem:[%s1] sm:$0xff]
    %v31 = vld [vmem:[%s1 + $0x8] sm:$0xf]
    %v32 = vld [vmem:[%s1 + $0x24] sm:$0xff]
    %v33 = vld [vmem:[%s1 + $0x2c] sm:$0xf]
    %v34 = vld [vmem:[%s1 + $0x48] sm:$0xff]
    %v35 = vld [vmem:[%s1 + $0x50] sm:$0xf]
    %v36 = vld [vmem:[%s1 + $0x6c] sm:$0xff]
    %v37 = vld [vmem:[%s1 + $0x74] sm:$0xf]
    %v38 = vld [vmem:[%s1 + $0xc] sm:$0xff]
    %v39 = vld [vmem:[%s1 + $0x14] sm:$0xff]
    %v40 = vld [vmem:[%s1 + $0x1c] sm:$0xff]
    %v41 = vld [vmem:[%s1 + $0x30] sm:$0xff]
    %v42 = vld [vmem:[%s1 + $0x38] sm:$0xff]
    %v43 = vld [vmem:[%s1 + $0x40] sm:$0xff]
    %v44 = vld [vmem:[%s1 + $0x54] sm:$0xff]
    %v45 = vld [vmem:[%s1 + $0x5c] sm:$0xff]
    %v46 = vld [vmem:[%s1 + $0x64] sm:$0xff]
    %v47 = vld [vmem:[%s1 + $0x78] sm:$0xff]
    %v48 = vld [vmem:[%s1 + $0x80] sm:$0xff]
    %v49 = vld [vmem:[%s1 + $0x88] sm:$0xff]
    %v58 = vunpack.c.l.b16 %v30
    %v59 = vunpack.c.h.b16 %v30
    %v60 = vunpack.c.l.b16 %v31
    %v61 = vunpack.c.l.b16 %v32
    %v62 = vunpack.c.h.b16 %v32
    %v63 = vunpack.c.l.b16 %v33
    %v64 = vunpack.c.l.b16 %v34
    %v65 = vunpack.c.h.b16 %v34
    %v66 = vunpack.c.l.b16 %v35
    %v67 = vunpack.c.l.b16 %v36
    %v68 = vunpack.c.h.b16 %v36
    %v69 = vunpack.c.l.b16 %v37
    %v70 = vpack.c.b16 %v61, %v58
    %v71 = vpack.c.b16 %v62, %v59
    %v72 = vpack.c.b16 %v63, %v60
    %v73 = vpack.c.b16 %v67, %v64
    %v74 = vpack.c.b16 %v68, %v65
    %v75 = vpack.c.b16 %v69, %v66
    %vm82 = vcmask 261120
    %v84 = vsel %vm82, %v23, 0
    %86 = vmatpush.bf16.msra.mxu0 0
    %87 = vmatpush.bf16.msra.mxu0 0
    %88 = vmatpush.bf16.msra.mxu0 0
    %89 = vmatpush.bf16.msra.mxu0 0
    %90 = vmatpush.bf16.msra.mxu0 0
    %91 = vmatpush.bf16.msra.mxu0 0
    %92 = vmatpush.bf16.msra.mxu0 %v73
    %93 = vmatpush.bf16.msra.mxu0 %v70
    %94 = vmatmul.bf16.gmra.mxu0 %v84
    %v95 = vpop.f32.mrf.mxu0
    %v96 = vadd.f32 0.0, %v95
    %v97 = vpop.f32.mrf.mxu0
    %v98 = vadd.f32 0.0, %v97
    %99 = vdwg.mxu0
    %100 = vmatpush.bf16.msra.mxu0 0
    %101 = vmatpush.bf16.msra.mxu0 0
    %102 = vmatpush.bf16.msra.mxu0 0
    %103 = vmatpush.bf16.msra.mxu0 0
    %104 = vmatpush.bf16.msra.mxu0 0
    %105 = vmatpush.bf16.msra.mxu0 0
    %106 = vmatpush.bf16.msra.mxu0 %v74
    %107 = vmatpush.bf16.msra.mxu0 %v71
    %108 = vmatmul.bf16.gmra.mxu0 %v84
    %v109 = vpop.f32.mrf.mxu0
    %v110 = vadd.f32 0.0, %v109
    %v111 = vpop.f32.mrf.mxu0
    %v112 = vadd.f32 0.0, %v111
    %113 = vdwg.mxu0
    %114 = vmatpush.bf16.msra.mxu0 0
    %115 = vmatpush.bf16.msra.mxu0 0
    %116 = vmatpush.bf16.msra.mxu0 0
    %117 = vmatpush.bf16.msra.mxu0 0
    %118 = vmatpush.bf16.msra.mxu0 0
    %119 = vmatpush.bf16.msra.mxu0 0
    %120 = vmatpush.bf16.msra.mxu0 %v75
    %121 = vmatpush.bf16.msra.mxu0 %v72
    %122 = vmatmul.bf16.gmra.mxu0 %v84
    %v123 = vpop.f32.mrf.mxu0
    %v124 = vadd.f32 0.0, %v123
    %v125 = vpop.f32.mrf.mxu0
    %v126 = vadd.f32 0.0, %v125
    %127 = vdwg.mxu0
    %v140 = vunpack.c.l.b16 %v38
    %v141 = vunpack.c.h.b16 %v38
    %v142 = vunpack.c.l.b16 %v39
    %v143 = vunpack.c.h.b16 %v39
    %v144 = vunpack.c.l.b16 %v40
    %v145 = vunpack.c.h.b16 %v40
    %v146 = vunpack.c.l.b16 %v41
    %v147 = vunpack.c.h.b16 %v41
    %v148 = vunpack.c.l.b16 %v42
    %v149 = vunpack.c.h.b16 %v42
    %v150 = vunpack.c.l.b16 %v43
    %v151 = vunpack.c.h.b16 %v43
    %v152 = vunpack.c.l.b16 %v44
    %v153 = vunpack.c.h.b16 %v44
    %v154 = vunpack.c.l.b16 %v45
    %v155 = vunpack.c.h.b16 %v45
    %v156 = vunpack.c.l.b16 %v46
    %v157 = vunpack.c.h.b16 %v46
    %v158 = vunpack.c.l.b16 %v47
    %v159 = vunpack.c.h.b16 %v47
    %v160 = vunpack.c.l.b16 %v48
    %v161 = vunpack.c.h.b16 %v48
    %v162 = vunpack.c.l.b16 %v49
    %v163 = vunpack.c.h.b16 %v49
    %v164 = vpack.c.b16 %v146, %v140
    %v165 = vpack.c.b16 %v147, %v141
    %v166 = vpack.c.b16 %v148, %v142
    %v167 = vpack.c.b16 %v149, %v143
    %v168 = vpack.c.b16 %v150, %v144
    %v169 = vpack.c.b16 %v151, %v145
    %v170 = vpack.c.b16 %v158, %v152
    %v171 = vpack.c.b16 %v159, %v153
    %v172 = vpack.c.b16 %v160, %v154
    %v173 = vpack.c.b16 %v161, %v155
    %v174 = vpack.c.b16 %v162, %v156
    %v175 = vpack.c.b16 %v163, %v157
    %v189 = vsel %vm82, %v28, 0
    %v192 = vsel %vm82, %v29, 0
    %194 = vmatpush.bf16.msra.mxu0 0
    %195 = vmatpush.bf16.msra.mxu0 0
    %196 = vmatpush.bf16.msra.mxu0 0
    %197 = vmatpush.bf16.msra.mxu0 0
    %198 = vmatpush.bf16.msra.mxu0 0
    %199 = vmatpush.bf16.msra.mxu0 0
    %200 = vmatpush.bf16.msra.mxu0 %v170
    %201 = vmatpush.bf16.msra.mxu0 %v164
    %202 = vmatmul.bf16.gmra.mxu0 %v189
    %v203 = vpop.f32.mrf.mxu0
    %v204 = vadd.f32 0.0, %v203
    %v205 = vpop.f32.mrf.mxu0
    %v206 = vadd.f32 0.0, %v205
    %207 = vmatmul.bf16.gmra.mxu0 %v192
    %v208 = vpop.f32.mrf.mxu0
    %v209 = vadd.f32 0.0, %v208
    %v210 = vpop.f32.mrf.mxu0
    %v211 = vadd.f32 0.0, %v210
    %212 = vdwg.mxu0
    %213 = vmatpush.bf16.msra.mxu0 0
    %214 = vmatpush.bf16.msra.mxu0 0
    %215 = vmatpush.bf16.msra.mxu0 0
    %216 = vmatpush.bf16.msra.mxu0 0
    %217 = vmatpush.bf16.msra.mxu0 0
    %218 = vmatpush.bf16.msra.mxu0 0
    %219 = vmatpush.bf16.msra.mxu0 %v171
    %220 = vmatpush.bf16.msra.mxu0 %v165
    %221 = vmatmul.bf16.gmra.mxu0 %v189
    %v222 = vpop.f32.mrf.mxu0
    %v223 = vadd.f32 0.0, %v222
    %v224 = vpop.f32.mrf.mxu0
    %v225 = vadd.f32 0.0, %v224
    %226 = vmatmul.bf16.gmra.mxu0 %v192
    %v227 = vpop.f32.mrf.mxu0
    %v228 = vadd.f32 0.0, %v227
    %v229 = vpop.f32.mrf.mxu0
    %v230 = vadd.f32 0.0, %v229
    %231 = vdwg.mxu0
    %232 = vmatpush.bf16.msra.mxu0 0
    %233 = vmatpush.bf16.msra.mxu0 0
    %234 = vmatpush.bf16.msra.mxu0 0
    %235 = vmatpush.bf16.msra.mxu0 0
    %236 = vmatpush.bf16.msra.mxu0 0
    %237 = vmatpush.bf16.msra.mxu0 0
    %238 = vmatpush.bf16.msra.mxu0 %v172
    %239 = vmatpush.bf16.msra.mxu0 %v166
    %240 = vmatmul.bf16.gmra.mxu0 %v189
    %v241 = vpop.f32.mrf.mxu0
    %v242 = vadd.f32 0.0, %v241
    %v243 = vpop.f32.mrf.mxu0
    %v244 = vadd.f32 0.0, %v243
    %245 = vmatmul.bf16.gmra.mxu0 %v192
    %v246 = vpop.f32.mrf.mxu0
    %v247 = vadd.f32 0.0, %v246
    %v248 = vpop.f32.mrf.mxu0
    %v249 = vadd.f32 0.0, %v248
    %250 = vdwg.mxu0
    %251 = vmatpush.bf16.msra.mxu0 0
    %252 = vmatpush.bf16.msra.mxu0 0
    %253 = vmatpush.bf16.msra.mxu0 0
    %254 = vmatpush.bf16.msra.mxu0 0
    %255 = vmatpush.bf16.msra.mxu0 0
    %256 = vmatpush.bf16.msra.mxu0 0
    %257 = vmatpush.bf16.msra.mxu0 %v173
    %258 = vmatpush.bf16.msra.mxu0 %v167
    %259 = vmatmul.bf16.gmra.mxu0 %v189
    %v260 = vpop.f32.mrf.mxu0
    %v261 = vadd.f32 0.0, %v260
    %v262 = vpop.f32.mrf.mxu0
    %v263 = vadd.f32 0.0, %v262
    %264 = vmatmul.bf16.gmra.mxu0 %v192
    %v265 = vpop.f32.mrf.mxu0
    %v266 = vadd.f32 0.0, %v265
    %v267 = vpop.f32.mrf.mxu0
    %v268 = vadd.f32 0.0, %v267
    %269 = vdwg.mxu0
    %270 = vmatpush.bf16.msra.mxu0 0
    %271 = vmatpush.bf16.msra.mxu0 0
    %272 = vmatpush.bf16.msra.mxu0 0
    %273 = vmatpush.bf16.msra.mxu0 0
    %274 = vmatpush.bf16.msra.mxu0 0
    %275 = vmatpush.bf16.msra.mxu0 0
    %276 = vmatpush.bf16.msra.mxu0 %v174
    %277 = vmatpush.bf16.msra.mxu0 %v168
    %278 = vmatmul.bf16.gmra.mxu0 %v189
    %v279 = vpop.f32.mrf.mxu0
    %v280 = vadd.f32 0.0, %v279
    %v281 = vpop.f32.mrf.mxu0
    %v282 = vadd.f32 0.0, %v281
    %283 = vmatmul.bf16.gmra.mxu0 %v192
    %v284 = vpop.f32.mrf.mxu0
    %v285 = vadd.f32 0.0, %v284
    %v286 = vpop.f32.mrf.mxu0
    %v287 = vadd.f32 0.0, %v286
    %288 = vdwg.mxu0
    %289 = vmatpush.bf16.msra.mxu0 0
    %290 = vmatpush.bf16.msra.mxu0 0
    %291 = vmatpush.bf16.msra.mxu0 0
    %292 = vmatpush.bf16.msra.mxu0 0
    %293 = vmatpush.bf16.msra.mxu0 0
    %294 = vmatpush.bf16.msra.mxu0 0
    %295 = vmatpush.bf16.msra.mxu0 %v175
    %296 = vmatpush.bf16.msra.mxu0 %v169
    %297 = vmatmul.bf16.gmra.mxu0 %v189
    %v298 = vpop.f32.mrf.mxu0
    %v299 = vadd.f32 0.0, %v298
    %v300 = vpop.f32.mrf.mxu0
    %v301 = vadd.f32 0.0, %v300
    %302 = vmatmul.bf16.gmra.mxu0 %v192
    %v303 = vpop.f32.mrf.mxu0
    %v304 = vadd.f32 0.0, %v303
    %v305 = vpop.f32.mrf.mxu0
    %v306 = vadd.f32 0.0, %v305
    %307 = vdwg.mxu0
    %vm308 = vcmask 523264
    %v310 = vsel %vm308, %v96, 0
    %v313 = vsel %vm308, %v204, 0
    %v316 = vsel %vm308, %v206, 0
    %318 = vmatpush.xpose.msra.mxu0 0.0
    %319 = vmatpush.xpose.msra.mxu0 0.0
    %320 = vmatpush.xpose.msra.mxu0 0.0
    %321 = vmatpush.xpose.msra.mxu0 0.0
    %322 = vmatpush.xpose.msra.mxu0 0.0
    %323 = vmatpush.xpose.msra.mxu0 0.0
    %324 = vmatpush.xpose.msra.mxu0 0.0
    %325 = vmatpush.xpose.msra.mxu0 0.0
    %326 = vmatpush.xpose.msra.mxu0 0.0
    %327 = vmatpush.xpose.msra.mxu0 0.0
    %328 = vmatpush.xpose.msra.mxu0 0.0
    %329 = vmatpush.xpose.msra.mxu0 0.0
    %330 = vmatpush.xpose.msra.mxu0 0.0
    %331 = vmatpush.xpose.msra.mxu0 0.0
    %332 = vmatpush.xpose.msra.mxu0 %v316
    %333 = vmatpush.xpose.msra.mxu0 %v313
    %334 = vmatmul.f32.gmra.mxu0 %v310
    %v335 = vpop.f32.mrf.mxu0
    %v336 = vadd.f32 0.0, %v335
    %337 = vdwg.mxu0
    %v339 = vsel %vm308, %v98, 0
    %v342 = vsel %vm308, %v209, 0
    %v345 = vsel %vm308, %v211, 0
    %347 = vmatpush.xpose.msra.mxu0 0.0
    %348 = vmatpush.xpose.msra.mxu0 0.0
    %349 = vmatpush.xpose.msra.mxu0 0.0
    %350 = vmatpush.xpose.msra.mxu0 0.0
    %351 = vmatpush.xpose.msra.mxu0 0.0
    %352 = vmatpush.xpose.msra.mxu0 0.0
    %353 = vmatpush.xpose.msra.mxu0 0.0
    %354 = vmatpush.xpose.msra.mxu0 0.0
    %355 = vmatpush.xpose.msra.mxu0 0.0
    %356 = vmatpush.xpose.msra.mxu0 0.0
    %357 = vmatpush.xpose.msra.mxu0 0.0
    %358 = vmatpush.xpose.msra.mxu0 0.0
    %359 = vmatpush.xpose.msra.mxu0 0.0
    %360 = vmatpush.xpose.msra.mxu0 0.0
    %361 = vmatpush.xpose.msra.mxu0 %v345
    %362 = vmatpush.xpose.msra.mxu0 %v342
    %363 = vmatmul.f32.gmra.mxu0 %v339
    %v364 = vpop.f32.mrf.mxu0
    %v365 = vadd.f32 0.0, %v364
    %366 = vdwg.mxu0
    %vm367 = vcmask 130048
    %v368 = vsel %vm367, %v336, -inf
    %369 = vmax.xlane.f32.xlu0 %v368
    %v370 = vpop.xlane.xlu0 %369
    %v371 = vsel %vm367, %v365, -inf
    %372 = vmax.xlane.f32.xlu0 %v371
    %v373 = vpop.xlane.xlu0 %372
    %v374 = vsub.f32 %v336, %v370
    %v375 = vsub.f32 %v365, %v373
    %v376 = vmul.f32 %v374, 1.442695
    %v377 = vpow.pop %v376
    %v378 = vmul.f32 %v375, 1.442695
    %v379 = vpow.pop %v378
    %v380 = vsel %vm367, %v377, 0.0
    %381 = vadd.xlane.f32.xlu0 %v380
    %v382 = vpop.xlane.xlu0 %381
    %v383 = vsel %vm367, %v379, 0.0
    %384 = vadd.xlane.f32.xlu0 %v383
    %v385 = vpop.xlane.xlu0 %384
    %v386 = vrcp.pop %v382
    %v387 = vrcp.pop %v385
    %v388 = vmul.f32 %v377, %v386
    %v389 = vmul.f32 %v379, %v387
    %390 = vst.msk [vmem:[%s5] sm:$0xff] %vm367, %v388
    %391 = vst.msk [vmem:[%s5 + $0x8] sm:$0xff] %vm367, %v389
    %v393 = vsel %vm367, %v388, 0
    %395 = vmatpush.msra.mxu0 0.0
    %396 = vmatpush.msra.mxu0 0.0
    %397 = vmatpush.msra.mxu0 0.0
    %398 = vmatpush.msra.mxu0 0.0
    %399 = vmatpush.msra.mxu0 0.0
    %400 = vmatpush.msra.mxu0 0.0
    %401 = vmatpush.msra.mxu0 0.0
    %402 = vmatpush.msra.mxu0 0.0
    %403 = vmatpush.msra.mxu0 0.0
    %404 = vmatpush.msra.mxu0 0.0
    %405 = vmatpush.msra.mxu0 0.0
    %406 = vmatpush.msra.mxu0 0.0
    %407 = vmatpush.msra.mxu0 0.0
    %408 = vmatpush.msra.mxu0 0.0
    %409 = vmatpush.msra.mxu0 %v263
    %410 = vmatpush.msra.mxu0 %v261
    %411 = vmatmul.f32.gmra.mxu0 %v393
    %v412 = vpop.f32.mrf.mxu0
    %v413 = vadd.f32 0.0, %v412
    %414 = vdwg.mxu0
    %v416 = vsel %vm367, %v389, 0
    %418 = vmatpush.msra.mxu0 0.0
    %419 = vmatpush.msra.mxu0 0.0
    %420 = vmatpush.msra.mxu0 0.0
    %421 = vmatpush.msra.mxu0 0.0
    %422 = vmatpush.msra.mxu0 0.0
    %423 = vmatpush.msra.mxu0 0.0
    %424 = vmatpush.msra.mxu0 0.0
    %425 = vmatpush.msra.mxu0 0.0
    %426 = vmatpush.msra.mxu0 0.0
    %427 = vmatpush.msra.mxu0 0.0
    %428 = vmatpush.msra.mxu0 0.0
    %429 = vmatpush.msra.mxu0 0.0
    %430 = vmatpush.msra.mxu0 0.0
    %431 = vmatpush.msra.mxu0 0.0
    %432 = vmatpush.msra.mxu0 %v268
    %433 = vmatpush.msra.mxu0 %v266
    %434 = vmatmul.f32.gmra.mxu0 %v416
    %v435 = vpop.f32.mrf.mxu0
    %v436 = vadd.f32 0.0, %v435
    %437 = vdwg.mxu0
    %438 = vrot.lane.b32.xlu0 %v96, 64
    %v439 = vpop.permute.xlu0 %438
    %440 = vrot.lane.b32.xlu0 %v204, 64
    %v441 = vpop.permute.xlu0 %440
    %442 = vrot.lane.b32.xlu0 %v206, 64
    %v443 = vpop.permute.xlu0 %442
    %v444 = vsel %vm308, %v439, 0
    %v446 = vsel %vm308, %v441, 0
    %v448 = vsel %vm308, %v443, 0
    %450 = vmatpush.xpose.msra.mxu0 0.0
    %451 = vmatpush.xpose.msra.mxu0 0.0
    %452 = vmatpush.xpose.msra.mxu0 0.0
    %453 = vmatpush.xpose.msra.mxu0 0.0
    %454 = vmatpush.xpose.msra.mxu0 0.0
    %455 = vmatpush.xpose.msra.mxu0 0.0
    %456 = vmatpush.xpose.msra.mxu0 0.0
    %457 = vmatpush.xpose.msra.mxu0 0.0
    %458 = vmatpush.xpose.msra.mxu0 0.0
    %459 = vmatpush.xpose.msra.mxu0 0.0
    %460 = vmatpush.xpose.msra.mxu0 0.0
    %461 = vmatpush.xpose.msra.mxu0 0.0
    %462 = vmatpush.xpose.msra.mxu0 0.0
    %463 = vmatpush.xpose.msra.mxu0 0.0
    %464 = vmatpush.xpose.msra.mxu0 %v448
    %465 = vmatpush.xpose.msra.mxu0 %v446
    %466 = vmatmul.f32.gmra.mxu0 %v444
    %v467 = vpop.f32.mrf.mxu0
    %v468 = vadd.f32 0.0, %v467
    %469 = vdwg.mxu0
    %470 = vrot.lane.b32.xlu0 %v98, 64
    %v471 = vpop.permute.xlu0 %470
    %472 = vrot.lane.b32.xlu0 %v209, 64
    %v473 = vpop.permute.xlu0 %472
    %474 = vrot.lane.b32.xlu0 %v211, 64
    %v475 = vpop.permute.xlu0 %474
    %v476 = vsel %vm308, %v471, 0
    %v478 = vsel %vm308, %v473, 0
    %v480 = vsel %vm308, %v475, 0
    %482 = vmatpush.xpose.msra.mxu0 0.0
    %483 = vmatpush.xpose.msra.mxu0 0.0
    %484 = vmatpush.xpose.msra.mxu0 0.0
    %485 = vmatpush.xpose.msra.mxu0 0.0
    %486 = vmatpush.xpose.msra.mxu0 0.0
    %487 = vmatpush.xpose.msra.mxu0 0.0
    %488 = vmatpush.xpose.msra.mxu0 0.0
    %489 = vmatpush.xpose.msra.mxu0 0.0
    %490 = vmatpush.xpose.msra.mxu0 0.0
    %491 = vmatpush.xpose.msra.mxu0 0.0
    %492 = vmatpush.xpose.msra.mxu0 0.0
    %493 = vmatpush.xpose.msra.mxu0 0.0
    %494 = vmatpush.xpose.msra.mxu0 0.0
    %495 = vmatpush.xpose.msra.mxu0 0.0
    %496 = vmatpush.xpose.msra.mxu0 %v480
    %497 = vmatpush.xpose.msra.mxu0 %v478
    %498 = vmatmul.f32.gmra.mxu0 %v476
    %v499 = vpop.f32.mrf.mxu0
    %v500 = vadd.f32 0.0, %v499
    %501 = vdwg.mxu0
    %v502 = vsel %vm367, %v468, -inf
    %503 = vmax.xlane.f32.xlu0 %v502
    %v504 = vpop.xlane.xlu0 %503
    %v505 = vsel %vm367, %v500, -inf
    %506 = vmax.xlane.f32.xlu0 %v505
    %v507 = vpop.xlane.xlu0 %506
    %v508 = vsub.f32 %v468, %v504
    %v509 = vsub.f32 %v500, %v507
    %v510 = vmul.f32 %v508, 1.442695
    %v511 = vpow.pop %v510
    %v512 = vmul.f32 %v509, 1.442695
    %v513 = vpow.pop %v512
    %v514 = vsel %vm367, %v511, 0.0
    %515 = vadd.xlane.f32.xlu0 %v514
    %v516 = vpop.xlane.xlu0 %515
    %v517 = vsel %vm367, %v513, 0.0
    %518 = vadd.xlane.f32.xlu0 %v517
    %v519 = vpop.xlane.xlu0 %518
    %v520 = vrcp.pop %v516
    %v521 = vrcp.pop %v519
    %v522 = vmul.f32 %v511, %v520
    %v523 = vmul.f32 %v513, %v521
    %s524 = scalar_lea.vmem %s5, 16
    %525 = vst.msk [vmem:[%s524] sm:$0xff] %vm367, %v522
    %526 = vst.msk [vmem:[%s524 + $0x8] sm:$0xff] %vm367, %v523
    %529 = vrot.lane.b32.xlu0 %v261, 64
    %v530 = vpop.permute.xlu0 %529
    %531 = vrot.lane.b32.xlu0 %v263, 64
    %v532 = vpop.permute.xlu0 %531
    %v536 = vsel %vm367, %v522, 0
    %538 = vmatpush.msra.mxu0 0.0
    %539 = vmatpush.msra.mxu0 0.0
    %540 = vmatpush.msra.mxu0 0.0
    %541 = vmatpush.msra.mxu0 0.0
    %542 = vmatpush.msra.mxu0 0.0
    %543 = vmatpush.msra.mxu0 0.0
    %544 = vmatpush.msra.mxu0 0.0
    %545 = vmatpush.msra.mxu0 0.0
    %546 = vmatpush.msra.mxu0 0.0
    %547 = vmatpush.msra.mxu0 0.0
    %548 = vmatpush.msra.mxu0 0.0
    %549 = vmatpush.msra.mxu0 0.0
    %550 = vmatpush.msra.mxu0 0.0
    %551 = vmatpush.msra.mxu0 0.0
    %552 = vmatpush.msra.mxu0 %v532
    %553 = vmatpush.msra.mxu0 %v530
    %554 = vmatmul.f32.gmra.mxu0 %v536
    %v555 = vpop.f32.mrf.mxu0
    %v556 = vadd.f32 0.0, %v555
    %557 = vdwg.mxu0
    %560 = vrot.lane.b32.xlu0 %v266, 64
    %v561 = vpop.permute.xlu0 %560
    %562 = vrot.lane.b32.xlu0 %v268, 64
    %v563 = vpop.permute.xlu0 %562
    %v567 = vsel %vm367, %v523, 0
    %569 = vmatpush.msra.mxu0 0.0
    %570 = vmatpush.msra.mxu0 0.0
    %571 = vmatpush.msra.mxu0 0.0
    %572 = vmatpush.msra.mxu0 0.0
    %573 = vmatpush.msra.mxu0 0.0
    %574 = vmatpush.msra.mxu0 0.0
    %575 = vmatpush.msra.mxu0 0.0
    %576 = vmatpush.msra.mxu0 0.0
    %577 = vmatpush.msra.mxu0 0.0
    %578 = vmatpush.msra.mxu0 0.0
    %579 = vmatpush.msra.mxu0 0.0
    %580 = vmatpush.msra.mxu0 0.0
    %581 = vmatpush.msra.mxu0 0.0
    %582 = vmatpush.msra.mxu0 0.0
    %583 = vmatpush.msra.mxu0 %v563
    %584 = vmatpush.msra.mxu0 %v561
    %585 = vmatmul.f32.gmra.mxu0 %v567
    %v586 = vpop.f32.mrf.mxu0
    %v587 = vadd.f32 0.0, %v586
    %588 = vdwg.mxu0
    %v590 = vsel %vm308, %v110, 0
    %v593 = vsel %vm308, %v223, 0
    %v596 = vsel %vm308, %v225, 0
    %598 = vmatpush.xpose.msra.mxu0 0.0
    %599 = vmatpush.xpose.msra.mxu0 0.0
    %600 = vmatpush.xpose.msra.mxu0 0.0
    %601 = vmatpush.xpose.msra.mxu0 0.0
    %602 = vmatpush.xpose.msra.mxu0 0.0
    %603 = vmatpush.xpose.msra.mxu0 0.0
    %604 = vmatpush.xpose.msra.mxu0 0.0
    %605 = vmatpush.xpose.msra.mxu0 0.0
    %606 = vmatpush.xpose.msra.mxu0 0.0
    %607 = vmatpush.xpose.msra.mxu0 0.0
    %608 = vmatpush.xpose.msra.mxu0 0.0
    %609 = vmatpush.xpose.msra.mxu0 0.0
    %610 = vmatpush.xpose.msra.mxu0 0.0
    %611 = vmatpush.xpose.msra.mxu0 0.0
    %612 = vmatpush.xpose.msra.mxu0 %v596
    %613 = vmatpush.xpose.msra.mxu0 %v593
    %614 = vmatmul.f32.gmra.mxu0 %v590
    %v615 = vpop.f32.mrf.mxu0
    %v616 = vadd.f32 0.0, %v615
    %617 = vdwg.mxu0
    %v619 = vsel %vm308, %v112, 0
    %v622 = vsel %vm308, %v228, 0
    %v625 = vsel %vm308, %v230, 0
    %627 = vmatpush.xpose.msra.mxu0 0.0
    %628 = vmatpush.xpose.msra.mxu0 0.0
    %629 = vmatpush.xpose.msra.mxu0 0.0
    %630 = vmatpush.xpose.msra.mxu0 0.0
    %631 = vmatpush.xpose.msra.mxu0 0.0
    %632 = vmatpush.xpose.msra.mxu0 0.0
    %633 = vmatpush.xpose.msra.mxu0 0.0
    %634 = vmatpush.xpose.msra.mxu0 0.0
    %635 = vmatpush.xpose.msra.mxu0 0.0
    %636 = vmatpush.xpose.msra.mxu0 0.0
    %637 = vmatpush.xpose.msra.mxu0 0.0
    %638 = vmatpush.xpose.msra.mxu0 0.0
    %639 = vmatpush.xpose.msra.mxu0 0.0
    %640 = vmatpush.xpose.msra.mxu0 0.0
    %641 = vmatpush.xpose.msra.mxu0 %v625
    %642 = vmatpush.xpose.msra.mxu0 %v622
    %643 = vmatmul.f32.gmra.mxu0 %v619
    %v644 = vpop.f32.mrf.mxu0
    %v645 = vadd.f32 0.0, %v644
    %646 = vdwg.mxu0
    %v647 = vsel %vm367, %v616, -inf
    %648 = vmax.xlane.f32.xlu0 %v647
    %v649 = vpop.xlane.xlu0 %648
    %v650 = vsel %vm367, %v645, -inf
    %651 = vmax.xlane.f32.xlu0 %v650
    %v652 = vpop.xlane.xlu0 %651
    %v653 = vsub.f32 %v616, %v649
    %v654 = vsub.f32 %v645, %v652
    %v655 = vmul.f32 %v653, 1.442695
    %v656 = vpow.pop %v655
    %v657 = vmul.f32 %v654, 1.442695
    %v658 = vpow.pop %v657
    %v659 = vsel %vm367, %v656, 0.0
    %660 = vadd.xlane.f32.xlu0 %v659
    %v661 = vpop.xlane.xlu0 %660
    %v662 = vsel %vm367, %v658, 0.0
    %663 = vadd.xlane.f32.xlu0 %v662
    %v664 = vpop.xlane.xlu0 %663
    %v665 = vrcp.pop %v661
    %v666 = vrcp.pop %v664
    %v667 = vmul.f32 %v656, %v665
    %v668 = vmul.f32 %v658, %v666
    %s669 = scalar_lea.vmem %s5, 32
    %670 = vst.msk [vmem:[%s669] sm:$0xff] %vm367, %v667
    %671 = vst.msk [vmem:[%s669 + $0x8] sm:$0xff] %vm367, %v668
    %v673 = vsel %vm367, %v667, 0
    %675 = vmatpush.msra.mxu0 0.0
    %676 = vmatpush.msra.mxu0 0.0
    %677 = vmatpush.msra.mxu0 0.0
    %678 = vmatpush.msra.mxu0 0.0
    %679 = vmatpush.msra.mxu0 0.0
    %680 = vmatpush.msra.mxu0 0.0
    %681 = vmatpush.msra.mxu0 0.0
    %682 = vmatpush.msra.mxu0 0.0
    %683 = vmatpush.msra.mxu0 0.0
    %684 = vmatpush.msra.mxu0 0.0
    %685 = vmatpush.msra.mxu0 0.0
    %686 = vmatpush.msra.mxu0 0.0
    %687 = vmatpush.msra.mxu0 0.0
    %688 = vmatpush.msra.mxu0 0.0
    %689 = vmatpush.msra.mxu0 %v282
    %690 = vmatpush.msra.mxu0 %v280
    %691 = vmatmul.f32.gmra.mxu0 %v673
    %v692 = vpop.f32.mrf.mxu0
    %v693 = vadd.f32 0.0, %v692
    %694 = vdwg.mxu0
    %v696 = vsel %vm367, %v668, 0
    %698 = vmatpush.msra.mxu0 0.0
    %699 = vmatpush.msra.mxu0 0.0
    %700 = vmatpush.msra.mxu0 0.0
    %701 = vmatpush.msra.mxu0 0.0
    %702 = vmatpush.msra.mxu0 0.0
    %703 = vmatpush.msra.mxu0 0.0
    %704 = vmatpush.msra.mxu0 0.0
    %705 = vmatpush.msra.mxu0 0.0
    %706 = vmatpush.msra.mxu0 0.0
    %707 = vmatpush.msra.mxu0 0.0
    %708 = vmatpush.msra.mxu0 0.0
    %709 = vmatpush.msra.mxu0 0.0
    %710 = vmatpush.msra.mxu0 0.0
    %711 = vmatpush.msra.mxu0 0.0
    %712 = vmatpush.msra.mxu0 %v287
    %713 = vmatpush.msra.mxu0 %v285
    %714 = vmatmul.f32.gmra.mxu0 %v696
    %v715 = vpop.f32.mrf.mxu0
    %v716 = vadd.f32 0.0, %v715
    %717 = vdwg.mxu0
    %718 = vrot.lane.b32.xlu0 %v110, 64
    %v719 = vpop.permute.xlu0 %718
    %720 = vrot.lane.b32.xlu0 %v223, 64
    %v721 = vpop.permute.xlu0 %720
    %722 = vrot.lane.b32.xlu0 %v225, 64
    %v723 = vpop.permute.xlu0 %722
    %v724 = vsel %vm308, %v719, 0
    %v726 = vsel %vm308, %v721, 0
    %v728 = vsel %vm308, %v723, 0
    %730 = vmatpush.xpose.msra.mxu0 0.0
    %731 = vmatpush.xpose.msra.mxu0 0.0
    %732 = vmatpush.xpose.msra.mxu0 0.0
    %733 = vmatpush.xpose.msra.mxu0 0.0
    %734 = vmatpush.xpose.msra.mxu0 0.0
    %735 = vmatpush.xpose.msra.mxu0 0.0
    %736 = vmatpush.xpose.msra.mxu0 0.0
    %737 = vmatpush.xpose.msra.mxu0 0.0
    %738 = vmatpush.xpose.msra.mxu0 0.0
    %739 = vmatpush.xpose.msra.mxu0 0.0
    %740 = vmatpush.xpose.msra.mxu0 0.0
    %741 = vmatpush.xpose.msra.mxu0 0.0
    %742 = vmatpush.xpose.msra.mxu0 0.0
    %743 = vmatpush.xpose.msra.mxu0 0.0
    %744 = vmatpush.xpose.msra.mxu0 %v728
    %745 = vmatpush.xpose.msra.mxu0 %v726
    %746 = vmatmul.f32.gmra.mxu0 %v724
    %v747 = vpop.f32.mrf.mxu0
    %v748 = vadd.f32 0.0, %v747
    %749 = vdwg.mxu0
    %750 = vrot.lane.b32.xlu0 %v112, 64
    %v751 = vpop.permute.xlu0 %750
    %752 = vrot.lane.b32.xlu0 %v228, 64
    %v753 = vpop.permute.xlu0 %752
    %754 = vrot.lane.b32.xlu0 %v230, 64
    %v755 = vpop.permute.xlu0 %754
    %v756 = vsel %vm308, %v751, 0
    %v758 = vsel %vm308, %v753, 0
    %v760 = vsel %vm308, %v755, 0
    %762 = vmatpush.xpose.msra.mxu0 0.0
    %763 = vmatpush.xpose.msra.mxu0 0.0
    %764 = vmatpush.xpose.msra.mxu0 0.0
    %765 = vmatpush.xpose.msra.mxu0 0.0
    %766 = vmatpush.xpose.msra.mxu0 0.0
    %767 = vmatpush.xpose.msra.mxu0 0.0
    %768 = vmatpush.xpose.msra.mxu0 0.0
    %769 = vmatpush.xpose.msra.mxu0 0.0
    %770 = vmatpush.xpose.msra.mxu0 0.0
    %771 = vmatpush.xpose.msra.mxu0 0.0
    %772 = vmatpush.xpose.msra.mxu0 0.0
    %773 = vmatpush.xpose.msra.mxu0 0.0
    %774 = vmatpush.xpose.msra.mxu0 0.0
    %775 = vmatpush.xpose.msra.mxu0 0.0
    %776 = vmatpush.xpose.msra.mxu0 %v760
    %777 = vmatpush.xpose.msra.mxu0 %v758
    %778 = vmatmul.f32.gmra.mxu0 %v756
    %v779 = vpop.f32.mrf.mxu0
    %v780 = vadd.f32 0.0, %v779
    %781 = vdwg.mxu0
    %v782 = vsel %vm367, %v748, -inf
    %783 = vmax.xlane.f32.xlu0 %v782
    %v784 = vpop.xlane.xlu0 %783
    %v785 = vsel %vm367, %v780, -inf
    %786 = vmax.xlane.f32.xlu0 %v785
    %v787 = vpop.xlane.xlu0 %786
    %v788 = vsub.f32 %v748, %v784
    %v789 = vsub.f32 %v780, %v787
    %v790 = vmul.f32 %v788, 1.442695
    %v791 = vpow.pop %v790
    %v792 = vmul.f32 %v789, 1.442695
    %v793 = vpow.pop %v792
    %v794 = vsel %vm367, %v791, 0.0
    %795 = vadd.xlane.f32.xlu0 %v794
    %v796 = vpop.xlane.xlu0 %795
    %v797 = vsel %vm367, %v793, 0.0
    %798 = vadd.xlane.f32.xlu0 %v797
    %v799 = vpop.xlane.xlu0 %798
    %v800 = vrcp.pop %v796
    %v801 = vrcp.pop %v799
    %v802 = vmul.f32 %v791, %v800
    %v803 = vmul.f32 %v793, %v801
    %s804 = scalar_lea.vmem %s5, 48
    %805 = vst.msk [vmem:[%s804] sm:$0xff] %vm367, %v802
    %806 = vst.msk [vmem:[%s804 + $0x8] sm:$0xff] %vm367, %v803
    %809 = vrot.lane.b32.xlu0 %v280, 64
    %v810 = vpop.permute.xlu0 %809
    %811 = vrot.lane.b32.xlu0 %v282, 64
    %v812 = vpop.permute.xlu0 %811
    %v816 = vsel %vm367, %v802, 0
    %818 = vmatpush.msra.mxu0 0.0
    %819 = vmatpush.msra.mxu0 0.0
    %820 = vmatpush.msra.mxu0 0.0
    %821 = vmatpush.msra.mxu0 0.0
    %822 = vmatpush.msra.mxu0 0.0
    %823 = vmatpush.msra.mxu0 0.0
    %824 = vmatpush.msra.mxu0 0.0
    %825 = vmatpush.msra.mxu0 0.0
    %826 = vmatpush.msra.mxu0 0.0
    %827 = vmatpush.msra.mxu0 0.0
    %828 = vmatpush.msra.mxu0 0.0
    %829 = vmatpush.msra.mxu0 0.0
    %830 = vmatpush.msra.mxu0 0.0
    %831 = vmatpush.msra.mxu0 0.0
    %832 = vmatpush.msra.mxu0 %v812
    %833 = vmatpush.msra.mxu0 %v810
    %834 = vmatmul.f32.gmra.mxu0 %v816
    %v835 = vpop.f32.mrf.mxu0
    %v836 = vadd.f32 0.0, %v835
    %837 = vdwg.mxu0
    %840 = vrot.lane.b32.xlu0 %v285, 64
    %v841 = vpop.permute.xlu0 %840
    %842 = vrot.lane.b32.xlu0 %v287, 64
    %v843 = vpop.permute.xlu0 %842
    %v847 = vsel %vm367, %v803, 0
    %849 = vmatpush.msra.mxu0 0.0
    %850 = vmatpush.msra.mxu0 0.0
    %851 = vmatpush.msra.mxu0 0.0
    %852 = vmatpush.msra.mxu0 0.0
    %853 = vmatpush.msra.mxu0 0.0
    %854 = vmatpush.msra.mxu0 0.0
    %855 = vmatpush.msra.mxu0 0.0
    %856 = vmatpush.msra.mxu0 0.0
    %857 = vmatpush.msra.mxu0 0.0
    %858 = vmatpush.msra.mxu0 0.0
    %859 = vmatpush.msra.mxu0 0.0
    %860 = vmatpush.msra.mxu0 0.0
    %861 = vmatpush.msra.mxu0 0.0
    %862 = vmatpush.msra.mxu0 0.0
    %863 = vmatpush.msra.mxu0 %v843
    %864 = vmatpush.msra.mxu0 %v841
    %865 = vmatmul.f32.gmra.mxu0 %v847
    %v866 = vpop.f32.mrf.mxu0
    %v867 = vadd.f32 0.0, %v866
    %868 = vdwg.mxu0
    %v870 = vsel %vm308, %v124, 0
    %v873 = vsel %vm308, %v242, 0
    %v876 = vsel %vm308, %v244, 0
    %878 = vmatpush.xpose.msra.mxu0 0.0
    %879 = vmatpush.xpose.msra.mxu0 0.0
    %880 = vmatpush.xpose.msra.mxu0 0.0
    %881 = vmatpush.xpose.msra.mxu0 0.0
    %882 = vmatpush.xpose.msra.mxu0 0.0
    %883 = vmatpush.xpose.msra.mxu0 0.0
    %884 = vmatpush.xpose.msra.mxu0 0.0
    %885 = vmatpush.xpose.msra.mxu0 0.0
    %886 = vmatpush.xpose.msra.mxu0 0.0
    %887 = vmatpush.xpose.msra.mxu0 0.0
    %888 = vmatpush.xpose.msra.mxu0 0.0
    %889 = vmatpush.xpose.msra.mxu0 0.0
    %890 = vmatpush.xpose.msra.mxu0 0.0
    %891 = vmatpush.xpose.msra.mxu0 0.0
    %892 = vmatpush.xpose.msra.mxu0 %v876
    %893 = vmatpush.xpose.msra.mxu0 %v873
    %894 = vmatmul.f32.gmra.mxu0 %v870
    %v895 = vpop.f32.mrf.mxu0
    %v896 = vadd.f32 0.0, %v895
    %897 = vdwg.mxu0
    %v899 = vsel %vm308, %v126, 0
    %v902 = vsel %vm308, %v247, 0
    %v905 = vsel %vm308, %v249, 0
    %907 = vmatpush.xpose.msra.mxu0 0.0
    %908 = vmatpush.xpose.msra.mxu0 0.0
    %909 = vmatpush.xpose.msra.mxu0 0.0
    %910 = vmatpush.xpose.msra.mxu0 0.0
    %911 = vmatpush.xpose.msra.mxu0 0.0
    %912 = vmatpush.xpose.msra.mxu0 0.0
    %913 = vmatpush.xpose.msra.mxu0 0.0
    %914 = vmatpush.xpose.msra.mxu0 0.0
    %915 = vmatpush.xpose.msra.mxu0 0.0
    %916 = vmatpush.xpose.msra.mxu0 0.0
    %917 = vmatpush.xpose.msra.mxu0 0.0
    %918 = vmatpush.xpose.msra.mxu0 0.0
    %919 = vmatpush.xpose.msra.mxu0 0.0
    %920 = vmatpush.xpose.msra.mxu0 0.0
    %921 = vmatpush.xpose.msra.mxu0 %v905
    %922 = vmatpush.xpose.msra.mxu0 %v902
    %923 = vmatmul.f32.gmra.mxu0 %v899
    %v924 = vpop.f32.mrf.mxu0
    %v925 = vadd.f32 0.0, %v924
    %926 = vdwg.mxu0
    %v927 = vsel %vm367, %v896, -inf
    %928 = vmax.xlane.f32.xlu0 %v927
    %v929 = vpop.xlane.xlu0 %928
    %v930 = vsel %vm367, %v925, -inf
    %931 = vmax.xlane.f32.xlu0 %v930
    %v932 = vpop.xlane.xlu0 %931
    %v933 = vsub.f32 %v896, %v929
    %v934 = vsub.f32 %v925, %v932
    %v935 = vmul.f32 %v933, 1.442695
    %v936 = vpow.pop %v935
    %v937 = vmul.f32 %v934, 1.442695
    %v938 = vpow.pop %v937
    %v939 = vsel %vm367, %v936, 0.0
    %940 = vadd.xlane.f32.xlu0 %v939
    %v941 = vpop.xlane.xlu0 %940
    %v942 = vsel %vm367, %v938, 0.0
    %943 = vadd.xlane.f32.xlu0 %v942
    %v944 = vpop.xlane.xlu0 %943
    %v945 = vrcp.pop %v941
    %v946 = vrcp.pop %v944
    %v947 = vmul.f32 %v936, %v945
    %v948 = vmul.f32 %v938, %v946
    %s949 = scalar_lea.vmem %s5, 64
    %950 = vst.msk [vmem:[%s949] sm:$0xff] %vm367, %v947
    %951 = vst.msk [vmem:[%s949 + $0x8] sm:$0xff] %vm367, %v948
    %v953 = vsel %vm367, %v947, 0
    %955 = vmatpush.msra.mxu0 0.0
    %956 = vmatpush.msra.mxu0 0.0
    %957 = vmatpush.msra.mxu0 0.0
    %958 = vmatpush.msra.mxu0 0.0
    %959 = vmatpush.msra.mxu0 0.0
    %960 = vmatpush.msra.mxu0 0.0
    %961 = vmatpush.msra.mxu0 0.0
    %962 = vmatpush.msra.mxu0 0.0
    %963 = vmatpush.msra.mxu0 0.0
    %964 = vmatpush.msra.mxu0 0.0
    %965 = vmatpush.msra.mxu0 0.0
    %966 = vmatpush.msra.mxu0 0.0
    %967 = vmatpush.msra.mxu0 0.0
    %968 = vmatpush.msra.mxu0 0.0
    %969 = vmatpush.msra.mxu0 %v301
    %970 = vmatpush.msra.mxu0 %v299
    %971 = vmatmul.f32.gmra.mxu0 %v953
    %v972 = vpop.f32.mrf.mxu0
    %v973 = vadd.f32 0.0, %v972
    %974 = vdwg.mxu0
    %v976 = vsel %vm367, %v948, 0
    %978 = vmatpush.msra.mxu0 0.0
    %979 = vmatpush.msra.mxu0 0.0
    %980 = vmatpush.msra.mxu0 0.0
    %981 = vmatpush.msra.mxu0 0.0
    %982 = vmatpush.msra.mxu0 0.0
    %983 = vmatpush.msra.mxu0 0.0
    %984 = vmatpush.msra.mxu0 0.0
    %985 = vmatpush.msra.mxu0 0.0
    %986 = vmatpush.msra.mxu0 0.0
    %987 = vmatpush.msra.mxu0 0.0
    %988 = vmatpush.msra.mxu0 0.0
    %989 = vmatpush.msra.mxu0 0.0
    %990 = vmatpush.msra.mxu0 0.0
    %991 = vmatpush.msra.mxu0 0.0
    %992 = vmatpush.msra.mxu0 %v306
    %993 = vmatpush.msra.mxu0 %v304
    %994 = vmatmul.f32.gmra.mxu0 %v976
    %v995 = vpop.f32.mrf.mxu0
    %v996 = vadd.f32 0.0, %v995
    %997 = vdwg.mxu0
    %998 = vrot.lane.b32.xlu0 %v124, 64
    %v999 = vpop.permute.xlu0 %998
    %1000 = vrot.lane.b32.xlu0 %v242, 64
    %v1001 = vpop.permute.xlu0 %1000
    %1002 = vrot.lane.b32.xlu0 %v244, 64
    %v1003 = vpop.permute.xlu0 %1002
    %v1004 = vsel %vm308, %v999, 0
    %v1006 = vsel %vm308, %v1001, 0
    %v1008 = vsel %vm308, %v1003, 0
    %1010 = vmatpush.xpose.msra.mxu0 0.0
    %1011 = vmatpush.xpose.msra.mxu0 0.0
    %1012 = vmatpush.xpose.msra.mxu0 0.0
    %1013 = vmatpush.xpose.msra.mxu0 0.0
    %1014 = vmatpush.xpose.msra.mxu0 0.0
    %1015 = vmatpush.xpose.msra.mxu0 0.0
    %1016 = vmatpush.xpose.msra.mxu0 0.0
    %1017 = vmatpush.xpose.msra.mxu0 0.0
    %1018 = vmatpush.xpose.msra.mxu0 0.0
    %1019 = vmatpush.xpose.msra.mxu0 0.0
    %1020 = vmatpush.xpose.msra.mxu0 0.0
    %1021 = vmatpush.xpose.msra.mxu0 0.0
    %1022 = vmatpush.xpose.msra.mxu0 0.0
    %1023 = vmatpush.xpose.msra.mxu0 0.0
    %1024 = vmatpush.xpose.msra.mxu0 %v1008
    %1025 = vmatpush.xpose.msra.mxu0 %v1006
    %1026 = vmatmul.f32.gmra.mxu0 %v1004
    %v1027 = vpop.f32.mrf.mxu0
    %v1028 = vadd.f32 0.0, %v1027
    %1029 = vdwg.mxu0
    %1030 = vrot.lane.b32.xlu0 %v126, 64
    %v1031 = vpop.permute.xlu0 %1030
    %1032 = vrot.lane.b32.xlu0 %v247, 64
    %v1033 = vpop.permute.xlu0 %1032
    %1034 = vrot.lane.b32.xlu0 %v249, 64
    %v1035 = vpop.permute.xlu0 %1034
    %v1036 = vsel %vm308, %v1031, 0
    %v1038 = vsel %vm308, %v1033, 0
    %v1040 = vsel %vm308, %v1035, 0
    %1042 = vmatpush.xpose.msra.mxu0 0.0
    %1043 = vmatpush.xpose.msra.mxu0 0.0
    %1044 = vmatpush.xpose.msra.mxu0 0.0
    %1045 = vmatpush.xpose.msra.mxu0 0.0
    %1046 = vmatpush.xpose.msra.mxu0 0.0
    %1047 = vmatpush.xpose.msra.mxu0 0.0
    %1048 = vmatpush.xpose.msra.mxu0 0.0
    %1049 = vmatpush.xpose.msra.mxu0 0.0
    %1050 = vmatpush.xpose.msra.mxu0 0.0
    %1051 = vmatpush.xpose.msra.mxu0 0.0
    %1052 = vmatpush.xpose.msra.mxu0 0.0
    %1053 = vmatpush.xpose.msra.mxu0 0.0
    %1054 = vmatpush.xpose.msra.mxu0 0.0
    %1055 = vmatpush.xpose.msra.mxu0 0.0
    %1056 = vmatpush.xpose.msra.mxu0 %v1040
    %1057 = vmatpush.xpose.msra.mxu0 %v1038
    %1058 = vmatmul.f32.gmra.mxu0 %v1036
    %v1059 = vpop.f32.mrf.mxu0
    %v1060 = vadd.f32 0.0, %v1059
    %1061 = vdwg.mxu0
    %v1062 = vsel %vm367, %v1028, -inf
    %1063 = vmax.xlane.f32.xlu0 %v1062
    %v1064 = vpop.xlane.xlu0 %1063
    %v1065 = vsel %vm367, %v1060, -inf
    %1066 = vmax.xlane.f32.xlu0 %v1065
    %v1067 = vpop.xlane.xlu0 %1066
    %v1068 = vsub.f32 %v1028, %v1064
    %v1069 = vsub.f32 %v1060, %v1067
    %v1070 = vmul.f32 %v1068, 1.442695
    %v1071 = vpow.pop %v1070
    %v1072 = vmul.f32 %v1069, 1.442695
    %v1073 = vpow.pop %v1072
    %v1074 = vsel %vm367, %v1071, 0.0
    %1075 = vadd.xlane.f32.xlu0 %v1074
    %v1076 = vpop.xlane.xlu0 %1075
    %v1077 = vsel %vm367, %v1073, 0.0
    %1078 = vadd.xlane.f32.xlu0 %v1077
    %v1079 = vpop.xlane.xlu0 %1078
    %v1080 = vrcp.pop %v1076
    %v1081 = vrcp.pop %v1079
    %v1082 = vmul.f32 %v1071, %v1080
    %v1083 = vmul.f32 %v1073, %v1081
    %s1084 = scalar_lea.vmem %s5, 80
    %1085 = vst.msk [vmem:[%s1084] sm:$0xff] %vm367, %v1082
    %1086 = vst.msk [vmem:[%s1084 + $0x8] sm:$0xff] %vm367, %v1083
    %1089 = vrot.lane.b32.xlu0 %v299, 64
    %v1090 = vpop.permute.xlu0 %1089
    %1091 = vrot.lane.b32.xlu0 %v301, 64
    %v1092 = vpop.permute.xlu0 %1091
    %v1096 = vsel %vm367, %v1082, 0
    %1098 = vmatpush.msra.mxu0 0.0
    %1099 = vmatpush.msra.mxu0 0.0
    %1100 = vmatpush.msra.mxu0 0.0
    %1101 = vmatpush.msra.mxu0 0.0
    %1102 = vmatpush.msra.mxu0 0.0
    %1103 = vmatpush.msra.mxu0 0.0
    %1104 = vmatpush.msra.mxu0 0.0
    %1105 = vmatpush.msra.mxu0 0.0
    %1106 = vmatpush.msra.mxu0 0.0
    %1107 = vmatpush.msra.mxu0 0.0
    %1108 = vmatpush.msra.mxu0 0.0
    %1109 = vmatpush.msra.mxu0 0.0
    %1110 = vmatpush.msra.mxu0 0.0
    %1111 = vmatpush.msra.mxu0 0.0
    %1112 = vmatpush.msra.mxu0 %v1092
    %1113 = vmatpush.msra.mxu0 %v1090
    %1114 = vmatmul.f32.gmra.mxu0 %v1096
    %v1115 = vpop.f32.mrf.mxu0
    %v1116 = vadd.f32 0.0, %v1115
    %1117 = vdwg.mxu0
    %1120 = vrot.lane.b32.xlu0 %v304, 64
    %v1121 = vpop.permute.xlu0 %1120
    %1122 = vrot.lane.b32.xlu0 %v306, 64
    %v1123 = vpop.permute.xlu0 %1122
    %v1127 = vsel %vm367, %v1083, 0
    %1129 = vmatpush.msra.mxu0 0.0
    %1130 = vmatpush.msra.mxu0 0.0
    %1131 = vmatpush.msra.mxu0 0.0
    %1132 = vmatpush.msra.mxu0 0.0
    %1133 = vmatpush.msra.mxu0 0.0
    %1134 = vmatpush.msra.mxu0 0.0
    %1135 = vmatpush.msra.mxu0 0.0
    %1136 = vmatpush.msra.mxu0 0.0
    %1137 = vmatpush.msra.mxu0 0.0
    %1138 = vmatpush.msra.mxu0 0.0
    %1139 = vmatpush.msra.mxu0 0.0
    %1140 = vmatpush.msra.mxu0 0.0
    %1141 = vmatpush.msra.mxu0 0.0
    %1142 = vmatpush.msra.mxu0 0.0
    %1143 = vmatpush.msra.mxu0 %v1123
    %1144 = vmatpush.msra.mxu0 %v1121
    %1145 = vmatmul.f32.gmra.mxu0 %v1127
    %v1146 = vpop.f32.mrf.mxu0
    %v1147 = vadd.f32 0.0, %v1146
    %1148 = vdwg.mxu0
    %1151 = vrot.lane.b32.xlu0 %v556, 64
    %v1152 = vpop.permute.xlu0 %1151
    %1153 = vrot.lane.b32.xlu0 %v587, 64
    %v1154 = vpop.permute.xlu0 %1153
    %1159 = vrot.lane.b32.xlu0 %v836, 64
    %v1160 = vpop.permute.xlu0 %1159
    %1161 = vrot.lane.b32.xlu0 %v867, 64
    %v1162 = vpop.permute.xlu0 %1161
    %1167 = vrot.lane.b32.xlu0 %v1116, 64
    %v1168 = vpop.permute.xlu0 %1167
    %1169 = vrot.lane.b32.xlu0 %v1147, 64
    %v1170 = vpop.permute.xlu0 %1169
    %v1173 = vsel %vm308, %v413, %v1152
    %v1174 = vsel %vm308, %v436, %v1154
    %v1175 = vsel %vm308, %v693, %v1160
    %v1176 = vsel %vm308, %v716, %v1162
    %v1177 = vsel %vm308, %v973, %v1168
    %v1178 = vsel %vm308, %v996, %v1170
    %v1179 = vpack.c.bf16 %v1174, %v1173
    %v1180 = vpack.c.bf16 %v1176, %v1175
    %v1181 = vpack.c.bf16 %v1178, %v1177
    %v1182 = vld [vmem:[%s2] sm:$0xf]
    %v1183 = vld [vmem:[%s2 + $0x4] sm:$0xf]
    %v1184 = vld [vmem:[%s2 + $0x8] sm:$0xf]
    %v1185 = vld [vmem:[%s2 + $0xc] sm:$0xf]
    %v1186 = vld [vmem:[%s2 + $0x10] sm:$0xf]
    %v1187 = vld [vmem:[%s2 + $0x14] sm:$0xf]
    %v1188 = vld [vmem:[%s2 + $0x18] sm:$0xf]
    %v1189 = vld [vmem:[%s2 + $0x1c] sm:$0xf]
    %v1190 = vld [vmem:[%s2 + $0x20] sm:$0xf]
    %v1191 = vld [vmem:[%s2 + $0x24] sm:$0xf]
    %v1192 = vld [vmem:[%s2 + $0x28] sm:$0xf]
    %v1193 = vld [vmem:[%s2 + $0x2c] sm:$0xf]
    %v1194 = vld [vmem:[%s2 + $0x30] sm:$0xf]
    %v1195 = vld [vmem:[%s2 + $0x34] sm:$0xf]
    %v1196 = vld [vmem:[%s2 + $0x38] sm:$0xf]
    %v1197 = vld [vmem:[%s2 + $0x3c] sm:$0xf]
    %v1198 = vld [vmem:[%s2 + $0x40] sm:$0xf]
    %v1199 = vld [vmem:[%s2 + $0x44] sm:$0xf]
    %v1200 = vld [vmem:[%s2 + $0x48] sm:$0xf]
    %v1201 = vld [vmem:[%s2 + $0x4c] sm:$0xf]
    %v1202 = vld [vmem:[%s2 + $0x50] sm:$0xf]
    %v1203 = vld [vmem:[%s2 + $0x54] sm:$0xf]
    %v1204 = vld [vmem:[%s2 + $0x58] sm:$0xf]
    %v1205 = vld [vmem:[%s2 + $0x5c] sm:$0xf]
    %v1206 = vld [vmem:[%s2 + $0x60] sm:$0xf]
    %v1207 = vld [vmem:[%s2 + $0x64] sm:$0xf]
    %v1208 = vld [vmem:[%s2 + $0x68] sm:$0xf]
    %v1209 = vld [vmem:[%s2 + $0x6c] sm:$0xf]
    %v1210 = vld [vmem:[%s2 + $0x70] sm:$0xf]
    %v1211 = vld [vmem:[%s2 + $0x74] sm:$0xf]
    %v1212 = vld [vmem:[%s2 + $0x78] sm:$0xf]
    %v1213 = vld [vmem:[%s2 + $0x7c] sm:$0xf]
    %v1214 = vld [vmem:[%s2 + $0x80] sm:$0xf]
    %v1215 = vld [vmem:[%s2 + $0x84] sm:$0xf]
    %v1216 = vld [vmem:[%s2 + $0x88] sm:$0xf]
    %v1217 = vld [vmem:[%s2 + $0x8c] sm:$0xf]
    %v1218 = vld [vmem:[%s2 + $0x90] sm:$0xf]
    %v1219 = vld [vmem:[%s2 + $0x94] sm:$0xf]
    %v1220 = vld [vmem:[%s2 + $0x98] sm:$0xf]
    %v1221 = vld [vmem:[%s2 + $0x9c] sm:$0xf]
    %v1222 = vld [vmem:[%s2 + $0xa0] sm:$0xf]
    %v1223 = vld [vmem:[%s2 + $0xa4] sm:$0xf]
    %v1224 = vld [vmem:[%s2 + $0xa8] sm:$0xf]
    %v1225 = vld [vmem:[%s2 + $0xac] sm:$0xf]
    %v1226 = vld [vmem:[%s2 + $0xb0] sm:$0xf]
    %v1227 = vld [vmem:[%s2 + $0xb4] sm:$0xf]
    %v1228 = vld [vmem:[%s2 + $0xb8] sm:$0xf]
    %v1229 = vld [vmem:[%s2 + $0xbc] sm:$0xf]
    %v1230 = vld [vmem:[%s3] sm:$0x1]
    %v1232 = vperm.slane %v1230, 0
    %v1282 = vunpack.c.l.b16 %v1182
    %v1283 = vunpack.c.l.b16 %v1183
    %v1284 = vunpack.c.l.b16 %v1184
    %v1285 = vunpack.c.l.b16 %v1185
    %v1286 = vunpack.c.l.b16 %v1186
    %v1287 = vunpack.c.l.b16 %v1187
    %v1288 = vunpack.c.l.b16 %v1188
    %v1289 = vunpack.c.l.b16 %v1189
    %v1290 = vunpack.c.l.b16 %v1190
    %v1291 = vunpack.c.l.b16 %v1191
    %v1292 = vunpack.c.l.b16 %v1192
    %v1293 = vunpack.c.l.b16 %v1193
    %v1294 = vunpack.c.l.b16 %v1194
    %v1295 = vunpack.c.l.b16 %v1195
    %v1296 = vunpack.c.l.b16 %v1196
    %v1297 = vunpack.c.l.b16 %v1197
    %v1298 = vunpack.c.l.b16 %v1198
    %v1299 = vunpack.c.l.b16 %v1199
    %v1300 = vunpack.c.l.b16 %v1200
    %v1301 = vunpack.c.l.b16 %v1201
    %v1302 = vunpack.c.l.b16 %v1202
    %v1303 = vunpack.c.l.b16 %v1203
    %v1304 = vunpack.c.l.b16 %v1204
    %v1305 = vunpack.c.l.b16 %v1205
    %v1306 = vunpack.c.l.b16 %v1206
    %v1307 = vunpack.c.l.b16 %v1207
    %v1308 = vunpack.c.l.b16 %v1208
    %v1309 = vunpack.c.l.b16 %v1209
    %v1310 = vunpack.c.l.b16 %v1210
    %v1311 = vunpack.c.l.b16 %v1211
    %v1312 = vunpack.c.l.b16 %v1212
    %v1313 = vunpack.c.l.b16 %v1213
    %v1314 = vunpack.c.l.b16 %v1214
    %v1315 = vunpack.c.l.b16 %v1215
    %v1316 = vunpack.c.l.b16 %v1216
    %v1317 = vunpack.c.l.b16 %v1217
    %v1318 = vunpack.c.l.b16 %v1218
    %v1319 = vunpack.c.l.b16 %v1219
    %v1320 = vunpack.c.l.b16 %v1220
    %v1321 = vunpack.c.l.b16 %v1221
    %v1322 = vunpack.c.l.b16 %v1222
    %v1323 = vunpack.c.l.b16 %v1223
    %v1324 = vunpack.c.l.b16 %v1224
    %v1325 = vunpack.c.l.b16 %v1225
    %v1326 = vunpack.c.l.b16 %v1226
    %v1327 = vunpack.c.l.b16 %v1227
    %v1328 = vunpack.c.l.b16 %v1228
    %v1329 = vunpack.c.l.b16 %v1229
    %v1330 = vpack.c.b16 %v1283, %v1282
    %v1331 = vpack.c.b16 %v1285, %v1284
    %v1332 = vpack.c.b16 %v1287, %v1286
    %v1333 = vpack.c.b16 %v1289, %v1288
    %v1334 = vpack.c.b16 %v1291, %v1290
    %v1335 = vpack.c.b16 %v1293, %v1292
    %v1336 = vpack.c.b16 %v1295, %v1294
    %v1337 = vpack.c.b16 %v1297, %v1296
    %v1338 = vpack.c.b16 %v1299, %v1298
    %v1339 = vpack.c.b16 %v1301, %v1300
    %v1340 = vpack.c.b16 %v1303, %v1302
    %v1341 = vpack.c.b16 %v1305, %v1304
    %v1342 = vpack.c.b16 %v1307, %v1306
    %v1343 = vpack.c.b16 %v1309, %v1308
    %v1344 = vpack.c.b16 %v1311, %v1310
    %v1345 = vpack.c.b16 %v1313, %v1312
    %v1346 = vpack.c.b16 %v1315, %v1314
    %v1347 = vpack.c.b16 %v1317, %v1316
    %v1348 = vpack.c.b16 %v1319, %v1318
    %v1349 = vpack.c.b16 %v1321, %v1320
    %v1350 = vpack.c.b16 %v1323, %v1322
    %v1351 = vpack.c.b16 %v1325, %v1324
    %v1352 = vpack.c.b16 %v1327, %v1326
    %v1353 = vpack.c.b16 %v1329, %v1328
    %1378 = vmatpush.bf16.msra.mxu0 %v1337
    %1379 = vmatpush.bf16.msra.mxu0 %v1336
    %1380 = vmatpush.bf16.msra.mxu0 %v1335
    %1381 = vmatpush.bf16.msra.mxu0 %v1334
    %1382 = vmatpush.bf16.msra.mxu0 %v1333
    %1383 = vmatpush.bf16.msra.mxu0 %v1332
    %1384 = vmatpush.bf16.msra.mxu0 %v1331
    %1385 = vmatpush.bf16.msra.mxu0 %v1330
    %1386 = vmatmul.bf16.gmra.mxu0 %v1179
    %v1387 = vpop.f32.mrf.mxu0
    %v1388 = vadd.f32 %v1232, %v1387
    %v1389 = vpop.f32.mrf.mxu0
    %v1390 = vadd.f32 %v1232, %v1389
    %1391 = vdwg.mxu0
    %1392 = vmatpush.bf16.msra.mxu0 %v1345
    %1393 = vmatpush.bf16.msra.mxu0 %v1344
    %1394 = vmatpush.bf16.msra.mxu0 %v1343
    %1395 = vmatpush.bf16.msra.mxu0 %v1342
    %1396 = vmatpush.bf16.msra.mxu0 %v1341
    %1397 = vmatpush.bf16.msra.mxu0 %v1340
    %1398 = vmatpush.bf16.msra.mxu0 %v1339
    %1399 = vmatpush.bf16.msra.mxu0 %v1338
    %1400 = vmatmul.bf16.gmra.mxu0 %v1180
    %v1401 = vpop.f32.mrf.mxu0
    %v1402 = vadd.f32 %v1388, %v1401
    %v1403 = vpop.f32.mrf.mxu0
    %v1404 = vadd.f32 %v1390, %v1403
    %1405 = vdwg.mxu0
    %1406 = vmatpush.bf16.msra.mxu0 %v1353
    %1407 = vmatpush.bf16.msra.mxu0 %v1352
    %1408 = vmatpush.bf16.msra.mxu0 %v1351
    %1409 = vmatpush.bf16.msra.mxu0 %v1350
    %1410 = vmatpush.bf16.msra.mxu0 %v1349
    %1411 = vmatpush.bf16.msra.mxu0 %v1348
    %1412 = vmatpush.bf16.msra.mxu0 %v1347
    %1413 = vmatpush.bf16.msra.mxu0 %v1346
    %1414 = vmatmul.bf16.gmra.mxu0 %v1181
    %v1415 = vpop.f32.mrf.mxu0
    %v1416 = vadd.f32 %v1402, %v1415
    %v1417 = vpop.f32.mrf.mxu0
    %v1418 = vadd.f32 %v1404, %v1417
    %1419 = vdwg.mxu0
    %1420 = vst.msk [vmem:[#allocation2] sm:$0xff] %vm82, %v1416
    %1421 = vst.msk [vmem:[#allocation2 + $0x8] sm:$0xff] %vm82, %v1418
    // Predicated region
    $region18: #{multi_head_attention.1} parent=1 // pred_check
      _
    $region19: #{multi_head_attention.1} parent=1 // pred_check_branch
      %1423 = sbr.rel (0) target = $region21
    $region20: #{multi_head_attention.1} parent=1 // pred_region
      %1425 = vsyncadd [#allocation3], 0
      %s1426 = sshll.u32 [#allocation2], 4
      %s1427 = int_to_ptr.vmem [resolvable:$true] %s1426
      %s1428 = sshll.u32 %s4, 4
      %s1429 = int_to_ptr.hbm [resolvable:$true] %s1428
      %1434 = dma.vmem_to_hbm [thread:$0]  %s1427, 256, %s1429, [#allocation3], 128, 128, 8
    $region21: #{multi_head_attention.1} parent=1 // pred_fallthru
      _
    // Predicated region
    $region22: #{multi_head_attention.1} parent=1 // pred_check
      _
    $region23: #{multi_head_attention.1} parent=1 // pred_check_branch
      %1436 = sbr.rel (0) target = $region25
    $region24: #{multi_head_attention.1} parent=1 // pred_region
      _
    $region25: #{multi_head_attention.1} parent=1 // pred_fallthru
      _
    // Predicated region
    $region26: #{multi_head_attention.1} parent=1 // pred_check
      _
    $region27: #{multi_head_attention.1} parent=1 // pred_check_branch
      %1438 = sbr.rel (0) target = $region29
    $region28: #{multi_head_attention.1} parent=1 // pred_region
      %1440 = dma.done [#allocation3], 256
    $region29: #{multi_head_attention.1} parent=1 // pred_fallthru
      _
    // Predicated region
    $region30: #{multi_head_attention.1} parent=1 // pred_check
      _
    $region31: #{multi_head_attention.1} parent=1 // pred_check_branch
      %1442 = sbr.rel (0) target = $region33
    $region32: #{multi_head_attention.1} parent=1 // pred_region
      _
    $region33: #{multi_head_attention.1} parent=1 // pred_fallthru
      _
    %1443 = vsyncpa [#allocation3], 1

</llo_original>
